<compile_context>
chip_gen: v5e
topology: v5e:2x2
jax: 0.10.0
libtpu: 0.0.40
codegen_flags: <defaults>
</compile_context>

<pallas_src>
import math

import jax
import jax.numpy as jnp
from jax.experimental import pallas as pl
from jax.experimental.pallas import tpu as pltpu

# ---------------- model hyper-parameters (small synthetic SBERT) -------------
BATCH = 2
SEQ = 8
HIDDEN = 32
NUM_HEADS = 2
HEAD_DIM = HIDDEN // NUM_HEADS
INTERMEDIATE = 64
NUM_LAYERS = 2
VOCAB = 100
MAX_POS = 16
LN_EPS = 1e-12
MLP_MID = HIDDEN // 4   # 8
MLP_OUT = HIDDEN // 8   # 4
OUT_LANES = 128         # lane-dense output slab width (wrapper slices :MLP_OUT)

MATMUL_DT = jnp.bfloat16  # MXU operand dtype; accumulation is always f32


# ------------------------------ kernel helpers -------------------------------
def _layernorm(x, g, b):
    mu = jnp.mean(x, axis=-1, keepdims=True)
    var = jnp.mean(jnp.square(x - mu), axis=-1, keepdims=True)
    return (x - mu) * jax.lax.rsqrt(var + LN_EPS) * g + b


def _mm(a, b):
    """bf16 x bf16 matmul with f32 accumulation (MXU)."""
    return jnp.dot(a.astype(MATMUL_DT), b.astype(MATMUL_DT),
                   preferred_element_type=jnp.float32)


# ------------------------------ fused Pallas kernel --------------------------
def fused_sbert_kernel(emb_ref, bias_ref, sel_ref, emb_ln_ref,
                       wqkv_ref, bqkv_ref, wo_ref, bo_ref, ln1_ref,
                       w1_ref, b1_ref, w2_ref, b2_ref, ln2_ref,
                       mw1_ref, mb1_ref, mw2_ref, mb2_ref,
                       out_ref):
    emb_ln = emb_ln_ref[...]                     # (2, H): [gamma, beta]
    x = _layernorm(emb_ref[...], emb_ln[0:1, :], emb_ln[1:2, :])   # (N, H) f32
    bias = bias_ref[...]                         # (N, N) block-diag + pad mask
    scale = 1.0 / math.sqrt(HEAD_DIM)

    for l in range(NUM_LAYERS):                  # static unroll (NUM_LAYERS=2)
        # ---- self-attention: packed QKV, heads accumulated through Wo ----
        qkv = _mm(x, wqkv_ref[l]) + bqkv_ref[l]            # (N, 3H) f32
        wo = wo_ref[l]                                     # (H, H) bf16
        attn = None
        for h in range(NUM_HEADS):                         # static unroll
            lo, hi = h * HEAD_DIM, (h + 1) * HEAD_DIM
            qh = qkv[:, lo:hi] * scale                     # fold 1/sqrt(d) into Q
            kh = qkv[:, HIDDEN + lo:HIDDEN + hi]
            vh = qkv[:, 2 * HIDDEN + lo:2 * HIDDEN + hi]
            s = jax.lax.dot_general(
                qh.astype(MATMUL_DT), kh.astype(MATMUL_DT),
                (((1,), (1,)), ((), ())),                  # q @ k^T
                preferred_element_type=jnp.float32) + bias
            s = s - jnp.max(s, axis=-1, keepdims=True)
            p = jnp.exp(s)
            p = p * pl.reciprocal(jnp.sum(p, axis=-1, keepdims=True), approx=True)
            ctx_h = _mm(p, vh)                             # (N, HEAD_DIM)
            contrib = _mm(ctx_h, wo[lo:hi, :])             # fold concat into Wo
            attn = contrib if attn is None else attn + contrib
        attn = attn + bo_ref[l]

        ln1 = ln1_ref[l]
        h1 = _layernorm(x + attn, ln1[0:1, :], ln1[1:2, :])

        # ---- feed-forward ----
        ff = _mm(h1, w1_ref[l]) + b1_ref[l]
        # TODO(synk): HF BERT uses exact erf GELU; tanh approximation kept for
        # guaranteed Mosaic lowering (negligible numeric difference here).
        ff = jax.nn.gelu(ff, approximate=True)
        ff = _mm(ff, w2_ref[l]) + b2_ref[l]
        ln2 = ln2_ref[l]
        x = _layernorm(h1 + ff, ln2[0:1, :], ln2[1:2, :])

    # ---- CLS rows via selection matmul (MXU; no strided gather/relayout) ----
    cls = _mm(sel_ref[...], x)                             # (2B, H)

    # ---- projection head: Linear -> ReLU -> (Dropout=id) -> Linear -> ReLU --
    hmid = jnp.maximum(_mm(cls, mw1_ref[...]) + mb1_ref[...], 0.0)
    out = jnp.maximum(_mm(hmid, mw2_ref[...]) + mb2_ref[...], 0.0)  # (2B, 128)
    out_ref[...] = out


# ------------------------------ wrapper ---------------------------------------
_VMEM = pl.BlockSpec(memory_space=pltpu.MemorySpace.VMEM)


def siamese_forward(params, q1_ids, q1_mask, q2_ids, q2_mask):
    # Both towers share weights: batch them together (2B sequences, one call).
    ids = jnp.concatenate([q1_ids, q2_ids], axis=0)        # (2B, S)
    mask = jnp.concatenate([q1_mask, q2_mask], axis=0)     # (2B, S)
    nb, s = ids.shape
    n_tok = nb * s

    # Embedding gathers stay in plain JAX (glue); everything else is Pallas.
    emb = (params["word_emb"][ids]
           + params["pos_emb"][:s][None, :, :]
           + params["type_emb"][0][None, None, :]).reshape(n_tok, HIDDEN)

    # Block-diagonal attention bias: 0 within the same sequence on valid keys,
    # -1e9 otherwise (cross-sequence or padded key).
    seq_id = jnp.repeat(jnp.arange(nb), s)
    same_seq = seq_id[:, None] == seq_id[None, :]
    key_valid = mask.reshape(-1) > 0
    bias = jnp.where(same_seq & key_valid[None, :], 0.0, -1e9).astype(jnp.float32)

    # CLS-token selection matrix: picks rows 0, S, 2S, ... of the flat activation.
    sel = jnp.zeros((nb, n_tok), jnp.float32)
    sel = sel.at[jnp.arange(nb), jnp.arange(nb) * s].set(1.0)

    out = pl.pallas_call(
        fused_sbert_kernel,
        out_shape=jax.ShapeDtypeStruct((nb, OUT_LANES), jnp.float32),
        in_specs=[_VMEM] * 18,
        out_specs=_VMEM,
    )(emb, bias, sel, params["emb_ln"],
      params["wqkv"], params["bqkv"], params["wo"], params["bo"], params["ln1"],
      params["w1"], params["b1"], params["w2"], params["b2"], params["ln2"],
      params["mlp_w1"], params["mlp_b1"], params["mlp_w2"], params["mlp_b2"])

    reduced = out[:, :MLP_OUT]                             # drop lane padding
    return reduced[:q1_ids.shape[0]], reduced[q1_ids.shape[0]:]


# ------------------------------ pure-JAX reference ----------------------------
def reference_forward(params, q1_ids, q1_mask, q2_ids, q2_mask):
    """Same math in plain jnp (same bf16 operand casts) for a correctness check."""
    ids = jnp.concatenate([q1_ids, q2_ids], axis=0)
    mask = jnp.concatenate([q1_mask, q2_mask], axis=0)
    nb, s = ids.shape
    n_tok = nb * s

    emb = (params["word_emb"][ids]
           + params["pos_emb"][:s][None, :, :]
           + params["type_emb"][0][None, None, :]).reshape(n_tok, HIDDEN)

    seq_id = jnp.repeat(jnp.arange(nb), s)
    same_seq = seq_id[:, None] == seq_id[None, :]
    key_valid = mask.reshape(-1) > 0
    bias = jnp.where(same_seq & key_valid[None, :], 0.0, -1e9).astype(jnp.float32)

    def mm(a, b):
        return jnp.dot(a.astype(MATMUL_DT), b.astype(MATMUL_DT),
                       preferred_element_type=jnp.float32)

    def ln(x, p):
        mu = jnp.mean(x, axis=-1, keepdims=True)
        var = jnp.mean(jnp.square(x - mu), axis=-1, keepdims=True)
        return (x - mu) * jax.lax.rsqrt(var + LN_EPS) * p[0:1, :] + p[1:2, :]

    x = ln(emb, params["emb_ln"])
    scale = 1.0 / math.sqrt(HEAD_DIM)
    for l in range(NUM_LAYERS):
        qkv = mm(x, params["wqkv"][l]) + params["bqkv"][l]
        attn = jnp.zeros((n_tok, HIDDEN), jnp.float32)
        for h in range(NUM_HEADS):
            lo, hi = h * HEAD_DIM, (h + 1) * HEAD_DIM
            qh = qkv[:, lo:hi] * scale
            kh = qkv[:, HIDDEN + lo:HIDDEN + hi]
            vh = qkv[:, 2 * HIDDEN + lo:2 * HIDDEN + hi]
            ss = mm(qh, kh.T) + bias
            p = jax.nn.softmax(ss, axis=-1)
            attn = attn + mm(mm(p, vh), params["wo"][l][lo:hi, :])
        attn = attn + params["bo"][l]
        h1 = ln(x + attn, params["ln1"][l])
        ff = mm(h1, params["w1"][l]) + params["b1"][l]
        ff = jax.nn.gelu(ff, approximate=True)
        ff = mm(ff, params["w2"][l]) + params["b2"][l]
        x = ln(h1 + ff, params["ln2"][l])

    cls = x[::s, :]                                        # CLS per sequence
    hmid = jnp.maximum(mm(cls, params["mlp_w1"]) + params["mlp_b1"], 0.0)
    out = jnp.maximum(mm(hmid, params["mlp_w2"]) + params["mlp_b2"], 0.0)
    red = out[:, :MLP_OUT]
    return red[:q1_ids.shape[0]], red[q1_ids.shape[0]:]


# ------------------------------ parameter init --------------------------------
def init_params(key):
    keys = iter(jax.random.split(key, 32))

    def rnd(shape):
        return jax.random.normal(next(keys), shape, jnp.float32) * 0.02

    def ln_pair():
        one = jnp.ones((1, HIDDEN), jnp.float32)
        zero = jnp.zeros((1, HIDDEN), jnp.float32)
        return jnp.concatenate([one, zero], axis=0)        # (2, H): [gamma, beta]

    params = {
        "word_emb": rnd((VOCAB, HIDDEN)),
        "pos_emb": rnd((MAX_POS, HIDDEN)),
        "type_emb": rnd((2, HIDDEN)),
        "emb_ln": ln_pair(),
        # stacked per-layer encoder weights (leading axis = layer); matmul
        # operands pre-cast to bf16 so no cast work happens inside the kernel.
        "wqkv": rnd((NUM_LAYERS, HIDDEN, 3 * HIDDEN)).astype(MATMUL_DT),
        "bqkv": rnd((NUM_LAYERS, 1, 3 * HIDDEN)),
        "wo":   rnd((NUM_LAYERS, HIDDEN, HIDDEN)).astype(MATMUL_DT),
        "bo":   rnd((NUM_LAYERS, 1, HIDDEN)),
        "ln1":  jnp.stack([ln_pair() for _ in range(NUM_LAYERS)], axis=0),
        "w1":   rnd((NUM_LAYERS, HIDDEN, INTERMEDIATE)).astype(MATMUL_DT),
        "b1":   rnd((NUM_LAYERS, 1, INTERMEDIATE)),
        "w2":   rnd((NUM_LAYERS, INTERMEDIATE, HIDDEN)).astype(MATMUL_DT),
        "b2":   rnd((NUM_LAYERS, 1, HIDDEN)),
        "ln2":  jnp.stack([ln_pair() for _ in range(NUM_LAYERS)], axis=0),
        "mlp_w1": rnd((HIDDEN, MLP_MID)).astype(MATMUL_DT),
        "mlp_b1": rnd((1, MLP_MID)),
    }
    # lane-pad the final projection so the kernel writes a lane-dense (2B, 128) slab
    mlp_w2 = rnd((MLP_MID, MLP_OUT))
    mlp_b2 = rnd((1, MLP_OUT))
    params["mlp_w2"] = jnp.pad(
        mlp_w2, ((0, 0), (0, OUT_LANES - MLP_OUT))).astype(MATMUL_DT)
    params["mlp_b2"] = jnp.pad(mlp_b2, ((0, 0), (0, OUT_LANES - MLP_OUT)))
    return params


# ------------------------------ main -------------------------------------------
if __name__ == "__main__":
    key = jax.random.PRNGKey(0)
    k_par, k_id1, k_id2 = jax.random.split(key, 3)

    params = init_params(k_par)

    q1_ids = jax.random.randint(k_id1, (BATCH, SEQ), 0, VOCAB, dtype=jnp.int32)
    q2_ids = jax.random.randint(k_id2, (BATCH, SEQ), 0, VOCAB, dtype=jnp.int32)
    # attention masks: first pair fully valid, second pair has trailing padding
    q1_mask = jnp.ones((BATCH, SEQ), jnp.int32)
    q2_mask = jnp.concatenate(
        [jnp.ones((BATCH, SEQ - 3), jnp.int32), jnp.zeros((BATCH, 3), jnp.int32)],
        axis=1)

    fwd = jax.jit(siamese_forward)
    q1_red, q2_red = fwd(params, q1_ids, q1_mask, q2_ids, q2_mask)
    jax.block_until_ready((q1_red, q2_red))

    assert q1_red.shape == (BATCH, MLP_OUT) and q2_red.shape == (BATCH, MLP_OUT)
    assert bool(jnp.all(jnp.isfinite(q1_red))) and bool(jnp.all(jnp.isfinite(q2_red)))
    # ReLU output must be non-negative
    assert bool(jnp.all(q1_red >= 0)) and bool(jnp.all(q2_red >= 0))

    # loose tolerance: approx-reciprocal softmax + MXU vs XLA accumulation order
    r1, r2 = jax.jit(reference_forward)(params, q1_ids, q1_mask, q2_ids, q2_mask)
    assert bool(jnp.allclose(q1_red, r1, atol=3e-2, rtol=3e-2)), "q1 mismatch vs reference"
    assert bool(jnp.allclose(q2_red, r2, atol=3e-2, rtol=3e-2)), "q2 mismatch vs reference"

    print("KERNEL_OK")
</pallas_src>

<mosaic_0001>
module attributes {stable_mosaic.version = 11 : i64} {
  func.func @fused_sbert_kernel(%arg0: memref<32x32xf32, #tpu.memory_space<vmem>>, %arg1: memref<32x32xf32, #tpu.memory_space<vmem>>, %arg2: memref<4x32xf32, #tpu.memory_space<vmem>>, %arg3: memref<2x32xf32, #tpu.memory_space<vmem>>, %arg4: memref<2x32x96xbf16, #tpu.memory_space<vmem>>, %arg5: memref<2x1x96xf32, #tpu.memory_space<vmem>>, %arg6: memref<2x32x32xbf16, #tpu.memory_space<vmem>>, %arg7: memref<2x1x32xf32, #tpu.memory_space<vmem>>, %arg8: memref<2x2x32xf32, #tpu.memory_space<vmem>>, %arg9: memref<2x32x64xbf16, #tpu.memory_space<vmem>>, %arg10: memref<2x1x64xf32, #tpu.memory_space<vmem>>, %arg11: memref<2x64x32xbf16, #tpu.memory_space<vmem>>, %arg12: memref<2x1x32xf32, #tpu.memory_space<vmem>>, %arg13: memref<2x2x32xf32, #tpu.memory_space<vmem>>, %arg14: memref<32x8xbf16, #tpu.memory_space<vmem>>, %arg15: memref<1x8xf32, #tpu.memory_space<vmem>>, %arg16: memref<8x128xbf16, #tpu.memory_space<vmem>>, %arg17: memref<1x128xf32, #tpu.memory_space<vmem>>, %arg18: memref<4x128xf32, #tpu.memory_space<vmem>>) attributes {dimension_semantics = [], scalar_prefetch = 0 : i64, scratch_operands = 0 : i64, tpu.core_type = #tpu.core_type<tc>} {
    %c0 = arith.constant 0 : index
    %c0_0 = arith.constant 0 : index
    %0 = vector.load %arg3[%c0, %c0_0] : memref<2x32xf32, #tpu.memory_space<vmem>>, vector<2x32xf32>
    %c0_1 = arith.constant 0 : index
    %c0_2 = arith.constant 0 : index
    %1 = vector.load %arg0[%c0_1, %c0_2] : memref<32x32xf32, #tpu.memory_space<vmem>>, vector<32x32xf32>
    %2 = vector.extract_strided_slice %0 {offsets = [0, 0], sizes = [1, 32], strides = [1, 1]} : vector<2x32xf32> to vector<1x32xf32>
    %3 = vector.extract_strided_slice %0 {offsets = [1, 0], sizes = [1, 32], strides = [1, 1]} : vector<2x32xf32> to vector<1x32xf32>
    %cst = arith.constant dense<0.000000e+00> : vector<32xf32>
    %4 = vector.multi_reduction <add>, %1, %cst [1] : vector<32x32xf32> to vector<32xf32>
    %5 = vector.shape_cast %4 : vector<32xf32> to vector<32x1xf32>
    %cst_3 = arith.constant 3.200000e+01 : f32
    %6 = vector.broadcast %cst_3 : f32 to vector<32x1xf32>
    %7 = arith.divf %5, %6 : vector<32x1xf32>
    %8 = vector.broadcast %7 : vector<32x1xf32> to vector<32x32xf32>
    %9 = arith.subf %1, %8 : vector<32x32xf32>
    %10 = arith.mulf %9, %9 : vector<32x32xf32>
    %cst_4 = arith.constant dense<0.000000e+00> : vector<32xf32>
    %11 = vector.multi_reduction <add>, %10, %cst_4 [1] : vector<32x32xf32> to vector<32xf32>
    %12 = vector.shape_cast %11 : vector<32xf32> to vector<32x1xf32>
    %cst_5 = arith.constant 3.200000e+01 : f32
    %13 = vector.broadcast %cst_5 : f32 to vector<32x1xf32>
    %14 = arith.divf %12, %13 : vector<32x1xf32>
    %15 = vector.broadcast %7 : vector<32x1xf32> to vector<32x32xf32>
    %16 = arith.subf %1, %15 : vector<32x32xf32>
    %cst_6 = arith.constant 9.99999996E-13 : f32
    %17 = vector.broadcast %cst_6 : f32 to vector<32x1xf32>
    %18 = arith.addf %14, %17 : vector<32x1xf32>
    %19 = math.rsqrt %18 : vector<32x1xf32>
    %20 = vector.broadcast %19 : vector<32x1xf32> to vector<32x32xf32>
    %21 = arith.mulf %16, %20 : vector<32x32xf32>
    %22 = vector.broadcast %2 : vector<1x32xf32> to vector<32x32xf32>
    %23 = arith.mulf %21, %22 : vector<32x32xf32>
    %24 = vector.broadcast %3 : vector<1x32xf32> to vector<32x32xf32>
    %25 = arith.addf %23, %24 : vector<32x32xf32>
    %c0_7 = arith.constant 0 : index
    %c0_8 = arith.constant 0 : index
    %26 = vector.load %arg1[%c0_7, %c0_8] : memref<32x32xf32, #tpu.memory_space<vmem>>, vector<32x32xf32>
    %c0_9 = arith.constant 0 : index
    %c0_10 = arith.constant 0 : index
    %c0_11 = arith.constant 0 : index
    %27 = vector.load %arg4[%c0_9, %c0_10, %c0_11] : memref<2x32x96xbf16, #tpu.memory_space<vmem>>, vector<1x32x96xbf16>
    %28 = vector.shape_cast %27 : vector<1x32x96xbf16> to vector<32x96xbf16>
    %29 = arith.truncf %25 : vector<32x32xf32> to vector<32x32xbf16>
    %cst_12 = arith.constant dense<0.000000e+00> : vector<32x96xf32>
    %30 = tpu.matmul %29, %28, %cst_12 {dimension_numbers = #tpu.dot_dimension_numbers<[1], [0], [0], [1], [0, 0, 1, 1], [], []>} : vector<32x32xbf16>, vector<32x96xbf16>, vector<32x96xf32> -> vector<32x96xf32>
    %c0_13 = arith.constant 0 : index
    %c0_14 = arith.constant 0 : index
    %c0_15 = arith.constant 0 : index
    %31 = vector.load %arg5[%c0_13, %c0_14, %c0_15] : memref<2x1x96xf32, #tpu.memory_space<vmem>>, vector<1x1x96xf32>
    %32 = vector.shape_cast %31 : vector<1x1x96xf32> to vector<1x96xf32>
    %33 = vector.broadcast %32 : vector<1x96xf32> to vector<32x96xf32>
    %34 = arith.addf %30, %33 : vector<32x96xf32>
    %c0_16 = arith.constant 0 : index
    %c0_17 = arith.constant 0 : index
    %c0_18 = arith.constant 0 : index
    %35 = vector.load %arg6[%c0_16, %c0_17, %c0_18] : memref<2x32x32xbf16, #tpu.memory_space<vmem>>, vector<1x32x32xbf16>
    %36 = vector.shape_cast %35 : vector<1x32x32xbf16> to vector<32x32xbf16>
    %37 = vector.extract_strided_slice %34 {offsets = [0, 0], sizes = [32, 16], strides = [1, 1]} : vector<32x96xf32> to vector<32x16xf32>
    %cst_19 = arith.constant 2.500000e-01 : f32
    %38 = vector.broadcast %cst_19 : f32 to vector<32x16xf32>
    %39 = arith.mulf %37, %38 : vector<32x16xf32>
    %40 = vector.extract_strided_slice %34 {offsets = [0, 32], sizes = [32, 16], strides = [1, 1]} : vector<32x96xf32> to vector<32x16xf32>
    %41 = vector.extract_strided_slice %34 {offsets = [0, 64], sizes = [32, 16], strides = [1, 1]} : vector<32x96xf32> to vector<32x16xf32>
    %42 = arith.truncf %39 : vector<32x16xf32> to vector<32x16xbf16>
    %43 = arith.truncf %40 : vector<32x16xf32> to vector<32x16xbf16>
    %cst_20 = arith.constant dense<0.000000e+00> : vector<32x32xf32>
    %44 = tpu.matmul %42, %43, %cst_20 {dimension_numbers = #tpu.dot_dimension_numbers<[1], [1], [0], [0], [0, 0, 1, 0], [], []>} : vector<32x16xbf16>, vector<32x16xbf16>, vector<32x32xf32> -> vector<32x32xf32>
    %45 = arith.addf %44, %26 : vector<32x32xf32>
    %cst_21 = arith.constant dense<0xFF800000> : vector<32xf32>
    %46 = vector.multi_reduction <maximumf>, %45, %cst_21 [1] : vector<32x32xf32> to vector<32xf32>
    %47 = vector.shape_cast %46 : vector<32xf32> to vector<32x1xf32>
    %48 = vector.broadcast %47 : vector<32x1xf32> to vector<32x32xf32>
    %49 = arith.subf %45, %48 : vector<32x32xf32>
    %50 = math.exp %49 : vector<32x32xf32>
    %cst_22 = arith.constant dense<0.000000e+00> : vector<32xf32>
    %51 = vector.multi_reduction <add>, %50, %cst_22 [1] : vector<32x32xf32> to vector<32xf32>
    %52 = vector.shape_cast %51 : vector<32xf32> to vector<32x1xf32>
    %53 = tpu.reciprocal %52 {approx = true} : vector<32x1xf32> -> vector<32x1xf32>
    %54 = vector.broadcast %53 : vector<32x1xf32> to vector<32x32xf32>
    %55 = arith.mulf %50, %54 : vector<32x32xf32>
    %56 = arith.truncf %55 : vector<32x32xf32> to vector<32x32xbf16>
    %57 = arith.truncf %41 : vector<32x16xf32> to vector<32x16xbf16>
    %cst_23 = arith.constant dense<0.000000e+00> : vector<32x16xf32>
    %58 = tpu.matmul %56, %57, %cst_23 {dimension_numbers = #tpu.dot_dimension_numbers<[1], [0], [0], [1], [0, 0, 1, 1], [], []>} : vector<32x32xbf16>, vector<32x16xbf16>, vector<32x16xf32> -> vector<32x16xf32>
    %59 = vector.extract_strided_slice %36 {offsets = [0, 0], sizes = [16, 32], strides = [1, 1]} : vector<32x32xbf16> to vector<16x32xbf16>
    %60 = arith.truncf %58 : vector<32x16xf32> to vector<32x16xbf16>
    %cst_24 = arith.constant dense<0.000000e+00> : vector<32x32xf32>
    %61 = tpu.matmul %60, %59, %cst_24 {dimension_numbers = #tpu.dot_dimension_numbers<[1], [0], [0], [1], [0, 0, 1, 1], [], []>} : vector<32x16xbf16>, vector<16x32xbf16>, vector<32x32xf32> -> vector<32x32xf32>
    %62 = vector.extract_strided_slice %34 {offsets = [0, 16], sizes = [32, 16], strides = [1, 1]} : vector<32x96xf32> to vector<32x16xf32>
    %cst_25 = arith.constant 2.500000e-01 : f32
    %63 = vector.broadcast %cst_25 : f32 to vector<32x16xf32>
    %64 = arith.mulf %62, %63 : vector<32x16xf32>
    %65 = vector.extract_strided_slice %34 {offsets = [0, 48], sizes = [32, 16], strides = [1, 1]} : vector<32x96xf32> to vector<32x16xf32>
    %66 = vector.extract_strided_slice %34 {offsets = [0, 80], sizes = [32, 16], strides = [1, 1]} : vector<32x96xf32> to vector<32x16xf32>
    %67 = arith.truncf %64 : vector<32x16xf32> to vector<32x16xbf16>
    %68 = arith.truncf %65 : vector<32x16xf32> to vector<32x16xbf16>
    %cst_26 = arith.constant dense<0.000000e+00> : vector<32x32xf32>
    %69 = tpu.matmul %67, %68, %cst_26 {dimension_numbers = #tpu.dot_dimension_numbers<[1], [1], [0], [0], [0, 0, 1, 0], [], []>} : vector<32x16xbf16>, vector<32x16xbf16>, vector<32x32xf32> -> vector<32x32xf32>
    %70 = arith.addf %69, %26 : vector<32x32xf32>
    %cst_27 = arith.constant dense<0xFF800000> : vector<32xf32>
    %71 = vector.multi_reduction <maximumf>, %70, %cst_27 [1] : vector<32x32xf32> to vector<32xf32>
    %72 = vector.shape_cast %71 : vector<32xf32> to vector<32x1xf32>
    %73 = vector.broadcast %72 : vector<32x1xf32> to vector<32x32xf32>
    %74 = arith.subf %70, %73 : vector<32x32xf32>
    %75 = math.exp %74 : vector<32x32xf32>
    %cst_28 = arith.constant dense<0.000000e+00> : vector<32xf32>
    %76 = vector.multi_reduction <add>, %75, %cst_28 [1] : vector<32x32xf32> to vector<32xf32>
    %77 = vector.shape_cast %76 : vector<32xf32> to vector<32x1xf32>
    %78 = tpu.reciprocal %77 {approx = true} : vector<32x1xf32> -> vector<32x1xf32>
    %79 = vector.broadcast %78 : vector<32x1xf32> to vector<32x32xf32>
    %80 = arith.mulf %75, %79 : vector<32x32xf32>
    %81 = arith.truncf %80 : vector<32x32xf32> to vector<32x32xbf16>
    %82 = arith.truncf %66 : vector<32x16xf32> to vector<32x16xbf16>
    %cst_29 = arith.constant dense<0.000000e+00> : vector<32x16xf32>
    %83 = tpu.matmul %81, %82, %cst_29 {dimension_numbers = #tpu.dot_dimension_numbers<[1], [0], [0], [1], [0, 0, 1, 1], [], []>} : vector<32x32xbf16>, vector<32x16xbf16>, vector<32x16xf32> -> vector<32x16xf32>
    %84 = vector.extract_strided_slice %36 {offsets = [16, 0], sizes = [16, 32], strides = [1, 1]} : vector<32x32xbf16> to vector<16x32xbf16>
    %85 = arith.truncf %83 : vector<32x16xf32> to vector<32x16xbf16>
    %cst_30 = arith.constant dense<0.000000e+00> : vector<32x32xf32>
    %86 = tpu.matmul %85, %84, %cst_30 {dimension_numbers = #tpu.dot_dimension_numbers<[1], [0], [0], [1], [0, 0, 1, 1], [], []>} : vector<32x16xbf16>, vector<16x32xbf16>, vector<32x32xf32> -> vector<32x32xf32>
    %87 = arith.addf %61, %86 : vector<32x32xf32>
    %c0_31 = arith.constant 0 : index
    %c0_32 = arith.constant 0 : index
    %c0_33 = arith.constant 0 : index
    %88 = vector.load %arg7[%c0_31, %c0_32, %c0_33] : memref<2x1x32xf32, #tpu.memory_space<vmem>>, vector<1x1x32xf32>
    %89 = vector.shape_cast %88 : vector<1x1x32xf32> to vector<1x32xf32>
    %90 = vector.broadcast %89 : vector<1x32xf32> to vector<32x32xf32>
    %91 = arith.addf %87, %90 : vector<32x32xf32>
    %c0_34 = arith.constant 0 : index
    %c0_35 = arith.constant 0 : index
    %c0_36 = arith.constant 0 : index
    %92 = vector.load %arg8[%c0_34, %c0_35, %c0_36] : memref<2x2x32xf32, #tpu.memory_space<vmem>>, vector<1x2x32xf32>
    %93 = vector.shape_cast %92 : vector<1x2x32xf32> to vector<2x32xf32>
    %94 = arith.addf %25, %91 : vector<32x32xf32>
    %95 = vector.extract_strided_slice %93 {offsets = [0, 0], sizes = [1, 32], strides = [1, 1]} : vector<2x32xf32> to vector<1x32xf32>
    %96 = vector.extract_strided_slice %93 {offsets = [1, 0], sizes = [1, 32], strides = [1, 1]} : vector<2x32xf32> to vector<1x32xf32>
    %cst_37 = arith.constant dense<0.000000e+00> : vector<32xf32>
    %97 = vector.multi_reduction <add>, %94, %cst_37 [1] : vector<32x32xf32> to vector<32xf32>
    %98 = vector.shape_cast %97 : vector<32xf32> to vector<32x1xf32>
    %cst_38 = arith.constant 3.200000e+01 : f32
    %99 = vector.broadcast %cst_38 : f32 to vector<32x1xf32>
    %100 = arith.divf %98, %99 : vector<32x1xf32>
    %101 = vector.broadcast %100 : vector<32x1xf32> to vector<32x32xf32>
    %102 = arith.subf %94, %101 : vector<32x32xf32>
    %103 = arith.mulf %102, %102 : vector<32x32xf32>
    %cst_39 = arith.constant dense<0.000000e+00> : vector<32xf32>
    %104 = vector.multi_reduction <add>, %103, %cst_39 [1] : vector<32x32xf32> to vector<32xf32>
    %105 = vector.shape_cast %104 : vector<32xf32> to vector<32x1xf32>
    %cst_40 = arith.constant 3.200000e+01 : f32
    %106 = vector.broadcast %cst_40 : f32 to vector<32x1xf32>
    %107 = arith.divf %105, %106 : vector<32x1xf32>
    %108 = vector.broadcast %100 : vector<32x1xf32> to vector<32x32xf32>
    %109 = arith.subf %94, %108 : vector<32x32xf32>
    %cst_41 = arith.constant 9.99999996E-13 : f32
    %110 = vector.broadcast %cst_41 : f32 to vector<32x1xf32>
    %111 = arith.addf %107, %110 : vector<32x1xf32>
    %112 = math.rsqrt %111 : vector<32x1xf32>
    %113 = vector.broadcast %112 : vector<32x1xf32> to vector<32x32xf32>
    %114 = arith.mulf %109, %113 : vector<32x32xf32>
    %115 = vector.broadcast %95 : vector<1x32xf32> to vector<32x32xf32>
    %116 = arith.mulf %114, %115 : vector<32x32xf32>
    %117 = vector.broadcast %96 : vector<1x32xf32> to vector<32x32xf32>
    %118 = arith.addf %116, %117 : vector<32x32xf32>
    %c0_42 = arith.constant 0 : index
    %c0_43 = arith.constant 0 : index
    %c0_44 = arith.constant 0 : index
    %119 = vector.load %arg9[%c0_42, %c0_43, %c0_44] : memref<2x32x64xbf16, #tpu.memory_space<vmem>>, vector<1x32x64xbf16>
    %120 = vector.shape_cast %119 : vector<1x32x64xbf16> to vector<32x64xbf16>
    %121 = arith.truncf %118 : vector<32x32xf32> to vector<32x32xbf16>
    %cst_45 = arith.constant dense<0.000000e+00> : vector<32x64xf32>
    %122 = tpu.matmul %121, %120, %cst_45 {dimension_numbers = #tpu.dot_dimension_numbers<[1], [0], [0], [1], [0, 0, 1, 1], [], []>} : vector<32x32xbf16>, vector<32x64xbf16>, vector<32x64xf32> -> vector<32x64xf32>
    %c0_46 = arith.constant 0 : index
    %c0_47 = arith.constant 0 : index
    %c0_48 = arith.constant 0 : index
    %123 = vector.load %arg10[%c0_46, %c0_47, %c0_48] : memref<2x1x64xf32, #tpu.memory_space<vmem>>, vector<1x1x64xf32>
    %124 = vector.shape_cast %123 : vector<1x1x64xf32> to vector<1x64xf32>
    %125 = vector.broadcast %124 : vector<1x64xf32> to vector<32x64xf32>
    %126 = arith.addf %122, %125 : vector<32x64xf32>
    %127 = arith.mulf %126, %126 : vector<32x64xf32>
    %128 = arith.mulf %126, %127 : vector<32x64xf32>
    %cst_49 = arith.constant 4.471500e-02 : f32
    %129 = vector.broadcast %cst_49 : f32 to vector<32x64xf32>
    %130 = arith.mulf %129, %128 : vector<32x64xf32>
    %131 = arith.addf %126, %130 : vector<32x64xf32>
    %cst_50 = arith.constant 0.797884583 : f32
    %132 = vector.broadcast %cst_50 : f32 to vector<32x64xf32>
    %133 = arith.mulf %132, %131 : vector<32x64xf32>
    %134 = math.tanh %133 : vector<32x64xf32>
    %cst_51 = arith.constant 1.000000e+00 : f32
    %135 = vector.broadcast %cst_51 : f32 to vector<32x64xf32>
    %136 = arith.addf %135, %134 : vector<32x64xf32>
    %cst_52 = arith.constant 5.000000e-01 : f32
    %137 = vector.broadcast %cst_52 : f32 to vector<32x64xf32>
    %138 = arith.mulf %137, %136 : vector<32x64xf32>
    %139 = arith.mulf %126, %138 : vector<32x64xf32>
    %c0_53 = arith.constant 0 : index
    %c0_54 = arith.constant 0 : index
    %c0_55 = arith.constant 0 : index
    %140 = vector.load %arg11[%c0_53, %c0_54, %c0_55] : memref<2x64x32xbf16, #tpu.memory_space<vmem>>, vector<1x64x32xbf16>
    %141 = vector.shape_cast %140 : vector<1x64x32xbf16> to vector<64x32xbf16>
    %142 = arith.truncf %139 : vector<32x64xf32> to vector<32x64xbf16>
    %cst_56 = arith.constant dense<0.000000e+00> : vector<32x32xf32>
    %143 = tpu.matmul %142, %141, %cst_56 {dimension_numbers = #tpu.dot_dimension_numbers<[1], [0], [0], [1], [0, 0, 1, 1], [], []>} : vector<32x64xbf16>, vector<64x32xbf16>, vector<32x32xf32> -> vector<32x32xf32>
    %c0_57 = arith.constant 0 : index
    %c0_58 = arith.constant 0 : index
    %c0_59 = arith.constant 0 : index
    %144 = vector.load %arg12[%c0_57, %c0_58, %c0_59] : memref<2x1x32xf32, #tpu.memory_space<vmem>>, vector<1x1x32xf32>
    %145 = vector.shape_cast %144 : vector<1x1x32xf32> to vector<1x32xf32>
    %146 = vector.broadcast %145 : vector<1x32xf32> to vector<32x32xf32>
    %147 = arith.addf %143, %146 : vector<32x32xf32>
    %c0_60 = arith.constant 0 : index
    %c0_61 = arith.constant 0 : index
    %c0_62 = arith.constant 0 : index
    %148 = vector.load %arg13[%c0_60, %c0_61, %c0_62] : memref<2x2x32xf32, #tpu.memory_space<vmem>>, vector<1x2x32xf32>
    %149 = vector.shape_cast %148 : vector<1x2x32xf32> to vector<2x32xf32>
    %150 = arith.addf %118, %147 : vector<32x32xf32>
    %151 = vector.extract_strided_slice %149 {offsets = [0, 0], sizes = [1, 32], strides = [1, 1]} : vector<2x32xf32> to vector<1x32xf32>
    %152 = vector.extract_strided_slice %149 {offsets = [1, 0], sizes = [1, 32], strides = [1, 1]} : vector<2x32xf32> to vector<1x32xf32>
    %cst_63 = arith.constant dense<0.000000e+00> : vector<32xf32>
    %153 = vector.multi_reduction <add>, %150, %cst_63 [1] : vector<32x32xf32> to vector<32xf32>
    %154 = vector.shape_cast %153 : vector<32xf32> to vector<32x1xf32>
    %cst_64 = arith.constant 3.200000e+01 : f32
    %155 = vector.broadcast %cst_64 : f32 to vector<32x1xf32>
    %156 = arith.divf %154, %155 : vector<32x1xf32>
    %157 = vector.broadcast %156 : vector<32x1xf32> to vector<32x32xf32>
    %158 = arith.subf %150, %157 : vector<32x32xf32>
    %159 = arith.mulf %158, %158 : vector<32x32xf32>
    %cst_65 = arith.constant dense<0.000000e+00> : vector<32xf32>
    %160 = vector.multi_reduction <add>, %159, %cst_65 [1] : vector<32x32xf32> to vector<32xf32>
    %161 = vector.shape_cast %160 : vector<32xf32> to vector<32x1xf32>
    %cst_66 = arith.constant 3.200000e+01 : f32
    %162 = vector.broadcast %cst_66 : f32 to vector<32x1xf32>
    %163 = arith.divf %161, %162 : vector<32x1xf32>
    %164 = vector.broadcast %156 : vector<32x1xf32> to vector<32x32xf32>
    %165 = arith.subf %150, %164 : vector<32x32xf32>
    %cst_67 = arith.constant 9.99999996E-13 : f32
    %166 = vector.broadcast %cst_67 : f32 to vector<32x1xf32>
    %167 = arith.addf %163, %166 : vector<32x1xf32>
    %168 = math.rsqrt %167 : vector<32x1xf32>
    %169 = vector.broadcast %168 : vector<32x1xf32> to vector<32x32xf32>
    %170 = arith.mulf %165, %169 : vector<32x32xf32>
    %171 = vector.broadcast %151 : vector<1x32xf32> to vector<32x32xf32>
    %172 = arith.mulf %170, %171 : vector<32x32xf32>
    %173 = vector.broadcast %152 : vector<1x32xf32> to vector<32x32xf32>
    %174 = arith.addf %172, %173 : vector<32x32xf32>
    %c1 = arith.constant 1 : index
    %c0_68 = arith.constant 0 : index
    %c0_69 = arith.constant 0 : index
    %175 = vector.load %arg4[%c1, %c0_68, %c0_69] : memref<2x32x96xbf16, #tpu.memory_space<vmem>>, vector<1x32x96xbf16>
    %176 = vector.shape_cast %175 : vector<1x32x96xbf16> to vector<32x96xbf16>
    %177 = arith.truncf %174 : vector<32x32xf32> to vector<32x32xbf16>
    %cst_70 = arith.constant dense<0.000000e+00> : vector<32x96xf32>
    %178 = tpu.matmul %177, %176, %cst_70 {dimension_numbers = #tpu.dot_dimension_numbers<[1], [0], [0], [1], [0, 0, 1, 1], [], []>} : vector<32x32xbf16>, vector<32x96xbf16>, vector<32x96xf32> -> vector<32x96xf32>
    %c1_71 = arith.constant 1 : index
    %c0_72 = arith.constant 0 : index
    %c0_73 = arith.constant 0 : index
    %179 = vector.load %arg5[%c1_71, %c0_72, %c0_73] : memref<2x1x96xf32, #tpu.memory_space<vmem>>, vector<1x1x96xf32>
    %180 = vector.shape_cast %179 : vector<1x1x96xf32> to vector<1x96xf32>
    %181 = vector.broadcast %180 : vector<1x96xf32> to vector<32x96xf32>
    %182 = arith.addf %178, %181 : vector<32x96xf32>
    %c1_74 = arith.constant 1 : index
    %c0_75 = arith.constant 0 : index
    %c0_76 = arith.constant 0 : index
    %183 = vector.load %arg6[%c1_74, %c0_75, %c0_76] : memref<2x32x32xbf16, #tpu.memory_space<vmem>>, vector<1x32x32xbf16>
    %184 = vector.shape_cast %183 : vector<1x32x32xbf16> to vector<32x32xbf16>
    %185 = vector.extract_strided_slice %182 {offsets = [0, 0], sizes = [32, 16], strides = [1, 1]} : vector<32x96xf32> to vector<32x16xf32>
    %cst_77 = arith.constant 2.500000e-01 : f32
    %186 = vector.broadcast %cst_77 : f32 to vector<32x16xf32>
    %187 = arith.mulf %185, %186 : vector<32x16xf32>
    %188 = vector.extract_strided_slice %182 {offsets = [0, 32], sizes = [32, 16], strides = [1, 1]} : vector<32x96xf32> to vector<32x16xf32>
    %189 = vector.extract_strided_slice %182 {offsets = [0, 64], sizes = [32, 16], strides = [1, 1]} : vector<32x96xf32> to vector<32x16xf32>
    %190 = arith.truncf %187 : vector<32x16xf32> to vector<32x16xbf16>
    %191 = arith.truncf %188 : vector<32x16xf32> to vector<32x16xbf16>
    %cst_78 = arith.constant dense<0.000000e+00> : vector<32x32xf32>
    %192 = tpu.matmul %190, %191, %cst_78 {dimension_numbers = #tpu.dot_dimension_numbers<[1], [1], [0], [0], [0, 0, 1, 0], [], []>} : vector<32x16xbf16>, vector<32x16xbf16>, vector<32x32xf32> -> vector<32x32xf32>
    %193 = arith.addf %192, %26 : vector<32x32xf32>
    %cst_79 = arith.constant dense<0xFF800000> : vector<32xf32>
    %194 = vector.multi_reduction <maximumf>, %193, %cst_79 [1] : vector<32x32xf32> to vector<32xf32>
    %195 = vector.shape_cast %194 : vector<32xf32> to vector<32x1xf32>
    %196 = vector.broadcast %195 : vector<32x1xf32> to vector<32x32xf32>
    %197 = arith.subf %193, %196 : vector<32x32xf32>
    %198 = math.exp %197 : vector<32x32xf32>
    %cst_80 = arith.constant dense<0.000000e+00> : vector<32xf32>
    %199 = vector.multi_reduction <add>, %198, %cst_80 [1] : vector<32x32xf32> to vector<32xf32>
    %200 = vector.shape_cast %199 : vector<32xf32> to vector<32x1xf32>
    %201 = tpu.reciprocal %200 {approx = true} : vector<32x1xf32> -> vector<32x1xf32>
    %202 = vector.broadcast %201 : vector<32x1xf32> to vector<32x32xf32>
    %203 = arith.mulf %198, %202 : vector<32x32xf32>
    %204 = arith.truncf %203 : vector<32x32xf32> to vector<32x32xbf16>
    %205 = arith.truncf %189 : vector<32x16xf32> to vector<32x16xbf16>
    %cst_81 = arith.constant dense<0.000000e+00> : vector<32x16xf32>
    %206 = tpu.matmul %204, %205, %cst_81 {dimension_numbers = #tpu.dot_dimension_numbers<[1], [0], [0], [1], [0, 0, 1, 1], [], []>} : vector<32x32xbf16>, vector<32x16xbf16>, vector<32x16xf32> -> vector<32x16xf32>
    %207 = vector.extract_strided_slice %184 {offsets = [0, 0], sizes = [16, 32], strides = [1, 1]} : vector<32x32xbf16> to vector<16x32xbf16>
    %208 = arith.truncf %206 : vector<32x16xf32> to vector<32x16xbf16>
    %cst_82 = arith.constant dense<0.000000e+00> : vector<32x32xf32>
    %209 = tpu.matmul %208, %207, %cst_82 {dimension_numbers = #tpu.dot_dimension_numbers<[1], [0], [0], [1], [0, 0, 1, 1], [], []>} : vector<32x16xbf16>, vector<16x32xbf16>, vector<32x32xf32> -> vector<32x32xf32>
    %210 = vector.extract_strided_slice %182 {offsets = [0, 16], sizes = [32, 16], strides = [1, 1]} : vector<32x96xf32> to vector<32x16xf32>
    %cst_83 = arith.constant 2.500000e-01 : f32
    %211 = vector.broadcast %cst_83 : f32 to vector<32x16xf32>
    %212 = arith.mulf %210, %211 : vector<32x16xf32>
    %213 = vector.extract_strided_slice %182 {offsets = [0, 48], sizes = [32, 16], strides = [1, 1]} : vector<32x96xf32> to vector<32x16xf32>
    %214 = vector.extract_strided_slice %182 {offsets = [0, 80], sizes = [32, 16], strides = [1, 1]} : vector<32x96xf32> to vector<32x16xf32>
    %215 = arith.truncf %212 : vector<32x16xf32> to vector<32x16xbf16>
    %216 = arith.truncf %213 : vector<32x16xf32> to vector<32x16xbf16>
    %cst_84 = arith.constant dense<0.000000e+00> : vector<32x32xf32>
    %217 = tpu.matmul %215, %216, %cst_84 {dimension_numbers = #tpu.dot_dimension_numbers<[1], [1], [0], [0], [0, 0, 1, 0], [], []>} : vector<32x16xbf16>, vector<32x16xbf16>, vector<32x32xf32> -> vector<32x32xf32>
    %218 = arith.addf %217, %26 : vector<32x32xf32>
    %cst_85 = arith.constant dense<0xFF800000> : vector<32xf32>
    %219 = vector.multi_reduction <maximumf>, %218, %cst_85 [1] : vector<32x32xf32> to vector<32xf32>
    %220 = vector.shape_cast %219 : vector<32xf32> to vector<32x1xf32>
    %221 = vector.broadcast %220 : vector<32x1xf32> to vector<32x32xf32>
    %222 = arith.subf %218, %221 : vector<32x32xf32>
    %223 = math.exp %222 : vector<32x32xf32>
    %cst_86 = arith.constant dense<0.000000e+00> : vector<32xf32>
    %224 = vector.multi_reduction <add>, %223, %cst_86 [1] : vector<32x32xf32> to vector<32xf32>
    %225 = vector.shape_cast %224 : vector<32xf32> to vector<32x1xf32>
    %226 = tpu.reciprocal %225 {approx = true} : vector<32x1xf32> -> vector<32x1xf32>
    %227 = vector.broadcast %226 : vector<32x1xf32> to vector<32x32xf32>
    %228 = arith.mulf %223, %227 : vector<32x32xf32>
    %229 = arith.truncf %228 : vector<32x32xf32> to vector<32x32xbf16>
    %230 = arith.truncf %214 : vector<32x16xf32> to vector<32x16xbf16>
    %cst_87 = arith.constant dense<0.000000e+00> : vector<32x16xf32>
    %231 = tpu.matmul %229, %230, %cst_87 {dimension_numbers = #tpu.dot_dimension_numbers<[1], [0], [0], [1], [0, 0, 1, 1], [], []>} : vector<32x32xbf16>, vector<32x16xbf16>, vector<32x16xf32> -> vector<32x16xf32>
    %232 = vector.extract_strided_slice %184 {offsets = [16, 0], sizes = [16, 32], strides = [1, 1]} : vector<32x32xbf16> to vector<16x32xbf16>
    %233 = arith.truncf %231 : vector<32x16xf32> to vector<32x16xbf16>
    %cst_88 = arith.constant dense<0.000000e+00> : vector<32x32xf32>
    %234 = tpu.matmul %233, %232, %cst_88 {dimension_numbers = #tpu.dot_dimension_numbers<[1], [0], [0], [1], [0, 0, 1, 1], [], []>} : vector<32x16xbf16>, vector<16x32xbf16>, vector<32x32xf32> -> vector<32x32xf32>
    %235 = arith.addf %209, %234 : vector<32x32xf32>
    %c1_89 = arith.constant 1 : index
    %c0_90 = arith.constant 0 : index
    %c0_91 = arith.constant 0 : index
    %236 = vector.load %arg7[%c1_89, %c0_90, %c0_91] : memref<2x1x32xf32, #tpu.memory_space<vmem>>, vector<1x1x32xf32>
    %237 = vector.shape_cast %236 : vector<1x1x32xf32> to vector<1x32xf32>
    %238 = vector.broadcast %237 : vector<1x32xf32> to vector<32x32xf32>
    %239 = arith.addf %235, %238 : vector<32x32xf32>
    %c1_92 = arith.constant 1 : index
    %c0_93 = arith.constant 0 : index
    %c0_94 = arith.constant 0 : index
    %240 = vector.load %arg8[%c1_92, %c0_93, %c0_94] : memref<2x2x32xf32, #tpu.memory_space<vmem>>, vector<1x2x32xf32>
    %241 = vector.shape_cast %240 : vector<1x2x32xf32> to vector<2x32xf32>
    %242 = arith.addf %174, %239 : vector<32x32xf32>
    %243 = vector.extract_strided_slice %241 {offsets = [0, 0], sizes = [1, 32], strides = [1, 1]} : vector<2x32xf32> to vector<1x32xf32>
    %244 = vector.extract_strided_slice %241 {offsets = [1, 0], sizes = [1, 32], strides = [1, 1]} : vector<2x32xf32> to vector<1x32xf32>
    %cst_95 = arith.constant dense<0.000000e+00> : vector<32xf32>
    %245 = vector.multi_reduction <add>, %242, %cst_95 [1] : vector<32x32xf32> to vector<32xf32>
    %246 = vector.shape_cast %245 : vector<32xf32> to vector<32x1xf32>
    %cst_96 = arith.constant 3.200000e+01 : f32
    %247 = vector.broadcast %cst_96 : f32 to vector<32x1xf32>
    %248 = arith.divf %246, %247 : vector<32x1xf32>
    %249 = vector.broadcast %248 : vector<32x1xf32> to vector<32x32xf32>
    %250 = arith.subf %242, %249 : vector<32x32xf32>
    %251 = arith.mulf %250, %250 : vector<32x32xf32>
    %cst_97 = arith.constant dense<0.000000e+00> : vector<32xf32>
    %252 = vector.multi_reduction <add>, %251, %cst_97 [1] : vector<32x32xf32> to vector<32xf32>
    %253 = vector.shape_cast %252 : vector<32xf32> to vector<32x1xf32>
    %cst_98 = arith.constant 3.200000e+01 : f32
    %254 = vector.broadcast %cst_98 : f32 to vector<32x1xf32>
    %255 = arith.divf %253, %254 : vector<32x1xf32>
    %256 = vector.broadcast %248 : vector<32x1xf32> to vector<32x32xf32>
    %257 = arith.subf %242, %256 : vector<32x32xf32>
    %cst_99 = arith.constant 9.99999996E-13 : f32
    %258 = vector.broadcast %cst_99 : f32 to vector<32x1xf32>
    %259 = arith.addf %255, %258 : vector<32x1xf32>
    %260 = math.rsqrt %259 : vector<32x1xf32>
    %261 = vector.broadcast %260 : vector<32x1xf32> to vector<32x32xf32>
    %262 = arith.mulf %257, %261 : vector<32x32xf32>
    %263 = vector.broadcast %243 : vector<1x32xf32> to vector<32x32xf32>
    %264 = arith.mulf %262, %263 : vector<32x32xf32>
    %265 = vector.broadcast %244 : vector<1x32xf32> to vector<32x32xf32>
    %266 = arith.addf %264, %265 : vector<32x32xf32>
    %c1_100 = arith.constant 1 : index
    %c0_101 = arith.constant 0 : index
    %c0_102 = arith.constant 0 : index
    %267 = vector.load %arg9[%c1_100, %c0_101, %c0_102] : memref<2x32x64xbf16, #tpu.memory_space<vmem>>, vector<1x32x64xbf16>
    %268 = vector.shape_cast %267 : vector<1x32x64xbf16> to vector<32x64xbf16>
    %269 = arith.truncf %266 : vector<32x32xf32> to vector<32x32xbf16>
    %cst_103 = arith.constant dense<0.000000e+00> : vector<32x64xf32>
    %270 = tpu.matmul %269, %268, %cst_103 {dimension_numbers = #tpu.dot_dimension_numbers<[1], [0], [0], [1], [0, 0, 1, 1], [], []>} : vector<32x32xbf16>, vector<32x64xbf16>, vector<32x64xf32> -> vector<32x64xf32>
    %c1_104 = arith.constant 1 : index
    %c0_105 = arith.constant 0 : index
    %c0_106 = arith.constant 0 : index
    %271 = vector.load %arg10[%c1_104, %c0_105, %c0_106] : memref<2x1x64xf32, #tpu.memory_space<vmem>>, vector<1x1x64xf32>
    %272 = vector.shape_cast %271 : vector<1x1x64xf32> to vector<1x64xf32>
    %273 = vector.broadcast %272 : vector<1x64xf32> to vector<32x64xf32>
    %274 = arith.addf %270, %273 : vector<32x64xf32>
    %275 = arith.mulf %274, %274 : vector<32x64xf32>
    %276 = arith.mulf %274, %275 : vector<32x64xf32>
    %cst_107 = arith.constant 4.471500e-02 : f32
    %277 = vector.broadcast %cst_107 : f32 to vector<32x64xf32>
    %278 = arith.mulf %277, %276 : vector<32x64xf32>
    %279 = arith.addf %274, %278 : vector<32x64xf32>
    %cst_108 = arith.constant 0.797884583 : f32
    %280 = vector.broadcast %cst_108 : f32 to vector<32x64xf32>
    %281 = arith.mulf %280, %279 : vector<32x64xf32>
    %282 = math.tanh %281 : vector<32x64xf32>
    %cst_109 = arith.constant 1.000000e+00 : f32
    %283 = vector.broadcast %cst_109 : f32 to vector<32x64xf32>
    %284 = arith.addf %283, %282 : vector<32x64xf32>
    %cst_110 = arith.constant 5.000000e-01 : f32
    %285 = vector.broadcast %cst_110 : f32 to vector<32x64xf32>
    %286 = arith.mulf %285, %284 : vector<32x64xf32>
    %287 = arith.mulf %274, %286 : vector<32x64xf32>
    %c1_111 = arith.constant 1 : index
    %c0_112 = arith.constant 0 : index
    %c0_113 = arith.constant 0 : index
    %288 = vector.load %arg11[%c1_111, %c0_112, %c0_113] : memref<2x64x32xbf16, #tpu.memory_space<vmem>>, vector<1x64x32xbf16>
    %289 = vector.shape_cast %288 : vector<1x64x32xbf16> to vector<64x32xbf16>
    %290 = arith.truncf %287 : vector<32x64xf32> to vector<32x64xbf16>
    %cst_114 = arith.constant dense<0.000000e+00> : vector<32x32xf32>
    %291 = tpu.matmul %290, %289, %cst_114 {dimension_numbers = #tpu.dot_dimension_numbers<[1], [0], [0], [1], [0, 0, 1, 1], [], []>} : vector<32x64xbf16>, vector<64x32xbf16>, vector<32x32xf32> -> vector<32x32xf32>
    %c1_115 = arith.constant 1 : index
    %c0_116 = arith.constant 0 : index
    %c0_117 = arith.constant 0 : index
    %292 = vector.load %arg12[%c1_115, %c0_116, %c0_117] : memref<2x1x32xf32, #tpu.memory_space<vmem>>, vector<1x1x32xf32>
    %293 = vector.shape_cast %292 : vector<1x1x32xf32> to vector<1x32xf32>
    %294 = vector.broadcast %293 : vector<1x32xf32> to vector<32x32xf32>
    %295 = arith.addf %291, %294 : vector<32x32xf32>
    %c1_118 = arith.constant 1 : index
    %c0_119 = arith.constant 0 : index
    %c0_120 = arith.constant 0 : index
    %296 = vector.load %arg13[%c1_118, %c0_119, %c0_120] : memref<2x2x32xf32, #tpu.memory_space<vmem>>, vector<1x2x32xf32>
    %297 = vector.shape_cast %296 : vector<1x2x32xf32> to vector<2x32xf32>
    %298 = arith.addf %266, %295 : vector<32x32xf32>
    %299 = vector.extract_strided_slice %297 {offsets = [0, 0], sizes = [1, 32], strides = [1, 1]} : vector<2x32xf32> to vector<1x32xf32>
    %300 = vector.extract_strided_slice %297 {offsets = [1, 0], sizes = [1, 32], strides = [1, 1]} : vector<2x32xf32> to vector<1x32xf32>
    %cst_121 = arith.constant dense<0.000000e+00> : vector<32xf32>
    %301 = vector.multi_reduction <add>, %298, %cst_121 [1] : vector<32x32xf32> to vector<32xf32>
    %302 = vector.shape_cast %301 : vector<32xf32> to vector<32x1xf32>
    %cst_122 = arith.constant 3.200000e+01 : f32
    %303 = vector.broadcast %cst_122 : f32 to vector<32x1xf32>
    %304 = arith.divf %302, %303 : vector<32x1xf32>
    %305 = vector.broadcast %304 : vector<32x1xf32> to vector<32x32xf32>
    %306 = arith.subf %298, %305 : vector<32x32xf32>
    %307 = arith.mulf %306, %306 : vector<32x32xf32>
    %cst_123 = arith.constant dense<0.000000e+00> : vector<32xf32>
    %308 = vector.multi_reduction <add>, %307, %cst_123 [1] : vector<32x32xf32> to vector<32xf32>
    %309 = vector.shape_cast %308 : vector<32xf32> to vector<32x1xf32>
    %cst_124 = arith.constant 3.200000e+01 : f32
    %310 = vector.broadcast %cst_124 : f32 to vector<32x1xf32>
    %311 = arith.divf %309, %310 : vector<32x1xf32>
    %312 = vector.broadcast %304 : vector<32x1xf32> to vector<32x32xf32>
    %313 = arith.subf %298, %312 : vector<32x32xf32>
    %cst_125 = arith.constant 9.99999996E-13 : f32
    %314 = vector.broadcast %cst_125 : f32 to vector<32x1xf32>
    %315 = arith.addf %311, %314 : vector<32x1xf32>
    %316 = math.rsqrt %315 : vector<32x1xf32>
    %317 = vector.broadcast %316 : vector<32x1xf32> to vector<32x32xf32>
    %318 = arith.mulf %313, %317 : vector<32x32xf32>
    %319 = vector.broadcast %299 : vector<1x32xf32> to vector<32x32xf32>
    %320 = arith.mulf %318, %319 : vector<32x32xf32>
    %321 = vector.broadcast %300 : vector<1x32xf32> to vector<32x32xf32>
    %322 = arith.addf %320, %321 : vector<32x32xf32>
    %c0_126 = arith.constant 0 : index
    %c0_127 = arith.constant 0 : index
    %323 = vector.load %arg2[%c0_126, %c0_127] : memref<4x32xf32, #tpu.memory_space<vmem>>, vector<4x32xf32>
    %324 = arith.truncf %323 : vector<4x32xf32> to vector<4x32xbf16>
    %325 = arith.truncf %322 : vector<32x32xf32> to vector<32x32xbf16>
    %cst_128 = arith.constant dense<0.000000e+00> : vector<4x32xf32>
    %326 = tpu.matmul %324, %325, %cst_128 {dimension_numbers = #tpu.dot_dimension_numbers<[1], [0], [0], [1], [0, 0, 1, 1], [], []>} : vector<4x32xbf16>, vector<32x32xbf16>, vector<4x32xf32> -> vector<4x32xf32>
    %c0_129 = arith.constant 0 : index
    %c0_130 = arith.constant 0 : index
    %327 = vector.load %arg14[%c0_129, %c0_130] : memref<32x8xbf16, #tpu.memory_space<vmem>>, vector<32x8xbf16>
    %328 = arith.truncf %326 : vector<4x32xf32> to vector<4x32xbf16>
    %cst_131 = arith.constant dense<0.000000e+00> : vector<4x8xf32>
    %329 = tpu.matmul %328, %327, %cst_131 {dimension_numbers = #tpu.dot_dimension_numbers<[1], [0], [0], [1], [0, 0, 1, 1], [], []>} : vector<4x32xbf16>, vector<32x8xbf16>, vector<4x8xf32> -> vector<4x8xf32>
    %c0_132 = arith.constant 0 : index
    %c0_133 = arith.constant 0 : index
    %330 = vector.load %arg15[%c0_132, %c0_133] : memref<1x8xf32, #tpu.memory_space<vmem>>, vector<1x8xf32>
    %331 = vector.broadcast %330 : vector<1x8xf32> to vector<4x8xf32>
    %332 = arith.addf %329, %331 : vector<4x8xf32>
    %cst_134 = arith.constant 0.000000e+00 : f32
    %333 = vector.broadcast %cst_134 : f32 to vector<4x8xf32>
    %334 = arith.maximumf %332, %333 : vector<4x8xf32>
    %c0_135 = arith.constant 0 : index
    %c0_136 = arith.constant 0 : index
    %335 = vector.load %arg16[%c0_135, %c0_136] : memref<8x128xbf16, #tpu.memory_space<vmem>>, vector<8x128xbf16>
    %336 = arith.truncf %334 : vector<4x8xf32> to vector<4x8xbf16>
    %cst_137 = arith.constant dense<0.000000e+00> : vector<4x128xf32>
    %337 = tpu.matmul %336, %335, %cst_137 {dimension_numbers = #tpu.dot_dimension_numbers<[1], [0], [0], [1], [0, 0, 1, 1], [], []>} : vector<4x8xbf16>, vector<8x128xbf16>, vector<4x128xf32> -> vector<4x128xf32>
    %c0_138 = arith.constant 0 : index
    %c0_139 = arith.constant 0 : index
    %338 = vector.load %arg17[%c0_138, %c0_139] : memref<1x128xf32, #tpu.memory_space<vmem>>, vector<1x128xf32>
    %339 = vector.broadcast %338 : vector<1x128xf32> to vector<4x128xf32>
    %340 = arith.addf %337, %339 : vector<4x128xf32>
    %cst_140 = arith.constant 0.000000e+00 : f32
    %341 = vector.broadcast %cst_140 : f32 to vector<4x128xf32>
    %342 = arith.maximumf %340, %341 : vector<4x128xf32>
    %c0_141 = arith.constant 0 : index
    %c0_142 = arith.constant 0 : index
    %343 = vector.load %arg18[%c0_141, %c0_142] : memref<4x128xf32, #tpu.memory_space<vmem>>, vector<4x128xf32>
    tpu.vector_store %arg18[%c0_141, %c0_142], %342 {strides = array<i32>} : memref<4x128xf32, #tpu.memory_space<vmem>>, vector<4x128xf32>,
    return
  }
}

</mosaic_0001>

<llo_original>
// kernel: eq.8
$region0: #{eq.8}
  %s0 = inlined_call_operand.vmem [shape: s32[4,8], index: 0, kind: input, shape index: {}]
  %s1 = inlined_call_operand.vmem [shape: s32[32], index: 1, kind: output, shape index: {}]
  $region1: #{eq.8} parent=0
    #allocation0 [shape = 'u8[4096]{0}', space=vmem, size = 0x1000, scoped, tag = 'scoped mem for output reshape']
    #allocation1 [shape = 'u8[4096]{0}', space=vmem, size = 0x1000, scoped, tag = 'scoped mem for input reshape']
    %s3 = ssub.s32 16, 1
    %v4 = vld [vmem:[%s0] sm:%s3]
    %5 = vst [vmem:[#allocation1] sm:%s3] %v4
    %v6 = vld [vmem:[#allocation1] sm:$0x1]
    %vm7 = vcmask 64512
    %8 = vst.msk [vmem:[#allocation0] sm:$0x1] %vm7, %v6
    %s9 = scalar_lea.vmem [#allocation1], 3
    %v10 = vld [vmem:[%s9] sm:$0x1]
    %11 = vrot.lane.b32.xlu0 %v10, 24
    %v12 = vpop.permute.xlu0 %11
    %vm13 = vcmask 261312
    %14 = vst.msk [vmem:[#allocation0] sm:$0x1] %vm13, %v12
    %s15 = scalar_lea.vmem [#allocation1], 2
    %v16 = vld [vmem:[%s15] sm:$0x1]
    %17 = vrot.lane.b32.xlu0 %v16, 16
    %v18 = vpop.permute.xlu0 %17
    %vm19 = vcmask 195712
    %20 = vst.msk [vmem:[#allocation0] sm:$0x1] %vm19, %v18
    %s21 = scalar_lea.vmem [#allocation1], 1
    %v22 = vld [vmem:[%s21] sm:$0x1]
    %23 = vrot.lane.b32.xlu0 %v22, 8
    %v24 = vpop.permute.xlu0 %23
    %vm25 = vcmask 130112
    %26 = vst.msk [vmem:[#allocation0] sm:$0x1] %vm25, %v24
    %s28 = ssub.s32 2, 1
    %v29 = vld [vmem:[#allocation0] sm:%s28]
    %s31 = ssub.s32 2, 1
    %32 = vst [vmem:[%s1] sm:%s31] %v29

// kernel: siamese_forward.1
$region0: #{siamese_forward.1}
  #allocation0 [shape = 'u32[]', space=smem, size = 0x4, offset = 0x4, fixed_abs, tag = 'smem constant byte address 0x4 - core index']
  #allocation1 [shape = 'u32[72,128]{1,0:T(1,128)}', space=vmem, size = 0x9000, scoped, tag = 'internal scratch']
  %s0 = inlined_call_operand.vmem [shape: f32[32,32], index: 0, kind: input, shape index: {}]
  %s1 = inlined_call_operand.vmem [shape: f32[32,32], index: 1, kind: input, shape index: {}]
  %s2 = inlined_call_operand.vmem [shape: f32[4,32], index: 2, kind: input, shape index: {}]
  %s3 = inlined_call_operand.vmem [shape: f32[2,32], index: 3, kind: input, shape index: {}]
  %s4 = inlined_call_operand.vmem [shape: bf16[2,32,96], index: 4, kind: input, shape index: {}]
  %s5 = inlined_call_operand.vmem [shape: f32[2,1,96], index: 5, kind: input, shape index: {}]
  %s6 = inlined_call_operand.vmem [shape: bf16[2,32,32], index: 6, kind: input, shape index: {}]
  %s7 = inlined_call_operand.vmem [shape: f32[2,1,32], index: 7, kind: input, shape index: {}]
  %s8 = inlined_call_operand.vmem [shape: f32[2,2,32], index: 8, kind: input, shape index: {}]
  %s9 = inlined_call_operand.vmem [shape: bf16[2,32,64], index: 9, kind: input, shape index: {}]
  %s10 = inlined_call_operand.vmem [shape: f32[2,1,64], index: 10, kind: input, shape index: {}]
  %s11 = inlined_call_operand.vmem [shape: bf16[2,64,32], index: 11, kind: input, shape index: {}]
  %s12 = inlined_call_operand.vmem [shape: f32[2,1,32], index: 12, kind: input, shape index: {}]
  %s13 = inlined_call_operand.vmem [shape: f32[2,2,32], index: 13, kind: input, shape index: {}]
  %s14 = inlined_call_operand.vmem [shape: bf16[32,8], index: 14, kind: input, shape index: {}]
  %s15 = inlined_call_operand.vmem [shape: f32[1,8], index: 15, kind: input, shape index: {}]
  %s16 = inlined_call_operand.vmem [shape: bf16[8,128], index: 16, kind: input, shape index: {}]
  %s17 = inlined_call_operand.vmem [shape: f32[1,128], index: 17, kind: input, shape index: {}]
  %s18 = inlined_call_operand.vmem [shape: f32[4,128], index: 18, kind: output, shape index: {}]
  %s19 = sld [smem:[#allocation0]]
  $region82: #{siamese_forward.1} parent=0
    _
  %s21 = ssub.s32 1, %s19
  %s22 = scalar_select 0, %s21, %s19
  // Predicated region
  $region2: #{siamese_forward.1} parent=0 // pred_check
    _
  $region3: #{siamese_forward.1} parent=0 // pred_check_branch
    %24 = sbr.rel (0) target = $region5
  $region4: #{siamese_forward.1} parent=0 // pred_region
    _
  $region5: #{siamese_forward.1} parent=0 // pred_fallthru
    _
  // Predicated region
  $region6: #{siamese_forward.1} parent=0 // pred_check
    _
  $region7: #{siamese_forward.1} parent=0 // pred_check_branch
    %26 = sbr.rel (0) target = $region9
  $region8: #{siamese_forward.1} parent=0 // pred_region
    _
  $region9: #{siamese_forward.1} parent=0 // pred_fallthru
    _
  // Predicated region
  $region10: #{siamese_forward.1} parent=0 // pred_check
    _
  $region11: #{siamese_forward.1} parent=0 // pred_check_branch
    %28 = sbr.rel (0) target = $region13
  $region12: #{siamese_forward.1} parent=0 // pred_region
    _
  $region13: #{siamese_forward.1} parent=0 // pred_fallthru
    _
  // Predicated region
  $region14: #{siamese_forward.1} parent=0 // pred_check
    _
  $region15: #{siamese_forward.1} parent=0 // pred_check_branch
    %30 = sbr.rel (0) target = $region17
  $region16: #{siamese_forward.1} parent=0 // pred_region
    _
  $region17: #{siamese_forward.1} parent=0 // pred_fallthru
    _
  // Predicated region
  $region18: #{siamese_forward.1} parent=0 // pred_check
    _
  $region19: #{siamese_forward.1} parent=0 // pred_check_branch
    %32 = sbr.rel (0) target = $region21
  $region20: #{siamese_forward.1} parent=0 // pred_region
    _
  $region21: #{siamese_forward.1} parent=0 // pred_fallthru
    _
  // Predicated region
  $region22: #{siamese_forward.1} parent=0 // pred_check
    _
  $region23: #{siamese_forward.1} parent=0 // pred_check_branch
    %34 = sbr.rel (0) target = $region25
  $region24: #{siamese_forward.1} parent=0 // pred_region
    _
  $region25: #{siamese_forward.1} parent=0 // pred_fallthru
    _
  // Predicated region
  $region26: #{siamese_forward.1} parent=0 // pred_check
    _
  $region27: #{siamese_forward.1} parent=0 // pred_check_branch
    %36 = sbr.rel (0) target = $region29
  $region28: #{siamese_forward.1} parent=0 // pred_region
    _
  $region29: #{siamese_forward.1} parent=0 // pred_fallthru
    _
  // Predicated region
  $region30: #{siamese_forward.1} parent=0 // pred_check
    _
  $region31: #{siamese_forward.1} parent=0 // pred_check_branch
    %38 = sbr.rel (0) target = $region33
  $region32: #{siamese_forward.1} parent=0 // pred_region
    _
  $region33: #{siamese_forward.1} parent=0 // pred_fallthru
    _
  // Predicated region
  $region34: #{siamese_forward.1} parent=0 // pred_check
    _
  $region35: #{siamese_forward.1} parent=0 // pred_check_branch
    %40 = sbr.rel (0) target = $region37
  $region36: #{siamese_forward.1} parent=0 // pred_region
    _
  $region37: #{siamese_forward.1} parent=0 // pred_fallthru
    _
  // Predicated region
  $region38: #{siamese_forward.1} parent=0 // pred_check
    _
  $region39: #{siamese_forward.1} parent=0 // pred_check_branch
    %42 = sbr.rel (0) target = $region41
  $region40: #{siamese_forward.1} parent=0 // pred_region
    _
  $region41: #{siamese_forward.1} parent=0 // pred_fallthru
    _
  // Predicated region
  $region42: #{siamese_forward.1} parent=0 // pred_check
    _
  $region43: #{siamese_forward.1} parent=0 // pred_check_branch
    %44 = sbr.rel (0) target = $region45
  $region44: #{siamese_forward.1} parent=0 // pred_region
    _
  $region45: #{siamese_forward.1} parent=0 // pred_fallthru
    _
  // Predicated region
  $region46: #{siamese_forward.1} parent=0 // pred_check
    _
  $region47: #{siamese_forward.1} parent=0 // pred_check_branch
    %46 = sbr.rel (0) target = $region49
  $region48: #{siamese_forward.1} parent=0 // pred_region
    _
  $region49: #{siamese_forward.1} parent=0 // pred_fallthru
    _
  // Predicated region
  $region50: #{siamese_forward.1} parent=0 // pred_check
    _
  $region51: #{siamese_forward.1} parent=0 // pred_check_branch
    %48 = sbr.rel (0) target = $region53
  $region52: #{siamese_forward.1} parent=0 // pred_region
    _
  $region53: #{siamese_forward.1} parent=0 // pred_fallthru
    _
  // Predicated region
  $region54: #{siamese_forward.1} parent=0 // pred_check
    _
  $region55: #{siamese_forward.1} parent=0 // pred_check_branch
    %50 = sbr.rel (0) target = $region57
  $region56: #{siamese_forward.1} parent=0 // pred_region
    _
  $region57: #{siamese_forward.1} parent=0 // pred_fallthru
    _
  // Predicated region
  $region58: #{siamese_forward.1} parent=0 // pred_check
    _
  $region59: #{siamese_forward.1} parent=0 // pred_check_branch
    %52 = sbr.rel (0) target = $region61
  $region60: #{siamese_forward.1} parent=0 // pred_region
    _
  $region61: #{siamese_forward.1} parent=0 // pred_fallthru
    _
  // Predicated region
  $region62: #{siamese_forward.1} parent=0 // pred_check
    _
  $region63: #{siamese_forward.1} parent=0 // pred_check_branch
    %54 = sbr.rel (0) target = $region65
  $region64: #{siamese_forward.1} parent=0 // pred_region
    _
  $region65: #{siamese_forward.1} parent=0 // pred_fallthru
    _
  // Predicated region
  $region66: #{siamese_forward.1} parent=0 // pred_check
    _
  $region67: #{siamese_forward.1} parent=0 // pred_check_branch
    %56 = sbr.rel (0) target = $region69
  $region68: #{siamese_forward.1} parent=0 // pred_region
    _
  $region69: #{siamese_forward.1} parent=0 // pred_fallthru
    _
  // Predicated region
  $region70: #{siamese_forward.1} parent=0 // pred_check
    _
  $region71: #{siamese_forward.1} parent=0 // pred_check_branch
    %58 = sbr.rel (0) target = $region73
  $region72: #{siamese_forward.1} parent=0 // pred_region
    _
  $region73: #{siamese_forward.1} parent=0 // pred_fallthru
    _
  %v60 = vld [vmem:[%s3] sm:$0x3]
  %v61 = vld [vmem:[%s0] sm:$0xff]
  %v62 = vld [vmem:[%s0 + $0x8] sm:$0xff]
  %v63 = vld [vmem:[%s0 + $0x10] sm:$0xff]
  %v64 = vld [vmem:[%s0 + $0x18] sm:$0xff]
  %vm65 = vcmask 261120
  %v66 = vsel %vm65, %v61, 0.0
  %67 = vadd.xlane.f32.xlu0 %v66
  %v68 = vpop.xlane.xlu0 %67
  %v69 = vsel %vm65, %v62, 0.0
  %70 = vadd.xlane.f32.xlu0 %v69
  %v71 = vpop.xlane.xlu0 %70
  %v72 = vsel %vm65, %v63, 0.0
  %73 = vadd.xlane.f32.xlu0 %v72
  %v74 = vpop.xlane.xlu0 %73
  %v75 = vsel %vm65, %v64, 0.0
  %76 = vadd.xlane.f32.xlu0 %v75
  %v77 = vpop.xlane.xlu0 %76
  %v78 = vrcp.pop 32.0
  %v79 = vmul.f32 32.0, %v78
  %v80 = vsub.f32 1.0, %v79
  %v81 = vmul.f32 %v78, %v80
  %v82 = vadd.f32 %v78, %v81
  %vm83 = vweird.f32 %v78
  %v84 = vsel %vm83, %v78, %v82
  %v85 = vmul.f32 %v68, %v84
  %v86 = vmul.f32 %v71, %v84
  %v87 = vmul.f32 %v74, %v84
  %v88 = vmul.f32 %v77, %v84
  %v89 = vsub.f32 %v61, %v85
  %v90 = vsub.f32 %v62, %v86
  %v91 = vsub.f32 %v63, %v87
  %v92 = vsub.f32 %v64, %v88
  %v93 = vmul.f32 %v89, %v89
  %v94 = vmul.f32 %v90, %v90
  %v95 = vmul.f32 %v91, %v91
  %v96 = vmul.f32 %v92, %v92
  %v97 = vsel %vm65, %v93, 0.0
  %98 = vadd.xlane.f32.xlu0 %v97
  %v99 = vpop.xlane.xlu0 %98
  %v100 = vsel %vm65, %v94, 0.0
  %101 = vadd.xlane.f32.xlu0 %v100
  %v102 = vpop.xlane.xlu0 %101
  %v103 = vsel %vm65, %v95, 0.0
  %104 = vadd.xlane.f32.xlu0 %v103
  %v105 = vpop.xlane.xlu0 %104
  %v106 = vsel %vm65, %v96, 0.0
  %107 = vadd.xlane.f32.xlu0 %v106
  %v108 = vpop.xlane.xlu0 %107
  %v109 = vmul.f32 %v99, %v84
  %v110 = vmul.f32 %v102, %v84
  %v111 = vmul.f32 %v105, %v84
  %v112 = vmul.f32 %v108, %v84
  %v113 = vadd.f32 %v109, 1e-12
  %v114 = vadd.f32 %v110, 1e-12
  %v115 = vadd.f32 %v111, 1e-12
  %v116 = vadd.f32 %v112, 1e-12
  %v117 = vrsqrt.pop %v113
  %v118 = vmul.f32 %v117, %v113
  %v119 = vmul.f32 %v118, %v117
  %v120 = vmul.f32 0.5, %v119
  %v121 = vsub.f32 1.5, %v120
  %v122 = vmul.f32 %v117, %v121
  %vm123 = vweird.f32 %v113
  %vm124 = vweird.f32 %v117
  %vm125 = vmor %vm123, %vm124
  %v126 = vsel %vm125, %v117, %v122
  %v127 = vrsqrt.pop %v114
  %v128 = vmul.f32 %v127, %v114
  %v129 = vmul.f32 %v128, %v127
  %v130 = vmul.f32 0.5, %v129
  %v131 = vsub.f32 1.5, %v130
  %v132 = vmul.f32 %v127, %v131
  %vm133 = vweird.f32 %v114
  %vm134 = vweird.f32 %v127
  %vm135 = vmor %vm133, %vm134
  %v136 = vsel %vm135, %v127, %v132
  %v137 = vrsqrt.pop %v115
  %v138 = vmul.f32 %v137, %v115
  %v139 = vmul.f32 %v138, %v137
  %v140 = vmul.f32 0.5, %v139
  %v141 = vsub.f32 1.5, %v140
  %v142 = vmul.f32 %v137, %v141
  %vm143 = vweird.f32 %v115
  %vm144 = vweird.f32 %v137
  %vm145 = vmor %vm143, %vm144
  %v146 = vsel %vm145, %v137, %v142
  %v147 = vrsqrt.pop %v116
  %v148 = vmul.f32 %v147, %v116
  %v149 = vmul.f32 %v148, %v147
  %v150 = vmul.f32 0.5, %v149
  %v151 = vsub.f32 1.5, %v150
  %v152 = vmul.f32 %v147, %v151
  %vm153 = vweird.f32 %v116
  %vm154 = vweird.f32 %v147
  %vm155 = vmor %vm153, %vm154
  %v156 = vsel %vm155, %v147, %v152
  %v157 = vmul.f32 %v89, %v126
  %v158 = vmul.f32 %v90, %v136
  %v159 = vmul.f32 %v91, %v146
  %v160 = vmul.f32 %v92, %v156
  %v161 = vperm.slane %v60, 0
  %v162 = vmul.f32 %v157, %v161
  %v163 = vmul.f32 %v158, %v161
  %v164 = vmul.f32 %v159, %v161
  %v165 = vmul.f32 %v160, %v161
  %v166 = vperm.slane %v60, 1
  %v167 = vadd.f32 %v162, %v166
  %v168 = vadd.f32 %v163, %v166
  %v169 = vadd.f32 %v164, %v166
  %v170 = vadd.f32 %v165, %v166
  %v171 = vld [vmem:[%s1] sm:$0xff]
  %v172 = vld [vmem:[%s1 + $0x8] sm:$0xff]
  %v173 = vld [vmem:[%s1 + $0x10] sm:$0xff]
  %v174 = vld [vmem:[%s1 + $0x18] sm:$0xff]
  %v175 = vld [vmem:[%s4] sm:$0xf]
  %v176 = vld [vmem:[%s4 + $0x4] sm:$0xf]
  %v177 = vld [vmem:[%s4 + $0x8] sm:$0xf]
  %v178 = vld [vmem:[%s4 + $0xc] sm:$0xf]
  %v179 = vpack.c.bf16 %v168, %v167
  %v180 = vpack.c.bf16 %v170, %v169
  %v181 = vld [vmem:[%s5] sm:$0x1]
  %v183 = vperm.slane %v181, 0
  %v189 = vunpack.c.l.b16 %v175
  %v190 = vunpack.c.l.b16 %v176
  %v191 = vunpack.c.l.b16 %v177
  %v192 = vunpack.c.l.b16 %v178
  %v193 = vpack.c.b16 %v190, %v189
  %v194 = vpack.c.b16 %v192, %v191
  %v198 = vsel %vm65, %v179, 0
  %v201 = vsel %vm65, %v180, 0
  %203 = vmatpush.bf16.msra.mxu0 0
  %204 = vmatpush.bf16.msra.mxu0 0
  %205 = vmatpush.bf16.msra.mxu0 0
  %206 = vmatpush.bf16.msra.mxu0 0
  %207 = vmatpush.bf16.msra.mxu0 0
  %208 = vmatpush.bf16.msra.mxu0 0
  %209 = vmatpush.bf16.msra.mxu0 %v194
  %210 = vmatpush.bf16.msra.mxu0 %v193
  %211 = vmatmul.bf16.gmra.mxu0 %v198
  %v212 = vpop.f32.mrf.mxu0
  %v213 = vadd.f32 %v183, %v212
  %v214 = vpop.f32.mrf.mxu0
  %v215 = vadd.f32 %v183, %v214
  %216 = vmatmul.bf16.gmra.mxu0 %v201
  %v217 = vpop.f32.mrf.mxu0
  %v218 = vadd.f32 %v183, %v217
  %v219 = vpop.f32.mrf.mxu0
  %v220 = vadd.f32 %v183, %v219
  %221 = vdwg.mxu0
  %v222 = vld [vmem:[%s6] sm:$0xf]
  %v223 = vld [vmem:[%s6 + $0x4] sm:$0xf]
  %v224 = vld [vmem:[%s6 + $0x8] sm:$0xf]
  %v225 = vld [vmem:[%s6 + $0xc] sm:$0xf]
  %v226 = vmul.f32 %v213, 0.25
  %v227 = vmul.f32 %v215, 0.25
  %v228 = vmul.f32 %v218, 0.25
  %v229 = vmul.f32 %v220, 0.25
  %v230 = vpack.c.bf16 %v227, %v226
  %v231 = vpack.c.bf16 %v229, %v228
  %v232 = vpack.c.bf16 %v215, %v213
  %v233 = vpack.c.bf16 %v220, %v218
  %236 = vrot.lane.b32.xlu0 %v232, 96
  %v237 = vpop.permute.xlu0 %236
  %238 = vrot.lane.b32.xlu0 %v233, 96
  %v239 = vpop.permute.xlu0 %238
  %vm240 = vcmask 130048
  %v242 = vsel %vm240, %v230, 0
  %v245 = vsel %vm240, %v231, 0
  %v248 = vsel %vm240, %v237, 0
  %v251 = vsel %vm240, %v239, 0
  %253 = vmatpush.bf16.xpose.msra.mxu0 0
  %254 = vmatpush.bf16.xpose.msra.mxu0 0
  %255 = vmatpush.bf16.xpose.msra.mxu0 0
  %256 = vmatpush.bf16.xpose.msra.mxu0 0
  %257 = vmatpush.bf16.xpose.msra.mxu0 0
  %258 = vmatpush.bf16.xpose.msra.mxu0 0
  %259 = vmatpush.bf16.xpose.msra.mxu0 %v251
  %260 = vmatpush.bf16.xpose.msra.mxu0 %v248
  %261 = vmatmul.bf16.gmra.mxu0 %v242
  %v262 = vpop.f32.mrf.mxu0
  %v263 = vadd.f32 %v171, %v262
  %v264 = vpop.f32.mrf.mxu0
  %v265 = vadd.f32 %v172, %v264
  %266 = vmatmul.bf16.gmra.mxu0 %v245
  %v267 = vpop.f32.mrf.mxu0
  %v268 = vadd.f32 %v173, %v267
  %v269 = vpop.f32.mrf.mxu0
  %v270 = vadd.f32 %v174, %v269
  %271 = vdwg.mxu0
  %v272 = vsel %vm65, %v263, -inf
  %273 = vmax.xlane.f32.xlu0 %v272
  %v274 = vpop.xlane.xlu0 %273
  %v275 = vsel %vm65, %v265, -inf
  %276 = vmax.xlane.f32.xlu0 %v275
  %v277 = vpop.xlane.xlu0 %276
  %v278 = vsel %vm65, %v268, -inf
  %279 = vmax.xlane.f32.xlu0 %v278
  %v280 = vpop.xlane.xlu0 %279
  %v281 = vsel %vm65, %v270, -inf
  %282 = vmax.xlane.f32.xlu0 %v281
  %v283 = vpop.xlane.xlu0 %282
  %v284 = vsub.f32 %v263, %v274
  %v285 = vsub.f32 %v265, %v277
  %v286 = vsub.f32 %v268, %v280
  %v287 = vsub.f32 %v270, %v283
  %v288 = vmul.f32 %v284, 1.442695
  %v289 = vpow.pop %v288
  %v290 = vmul.f32 %v285, 1.442695
  %v291 = vpow.pop %v290
  %v292 = vmul.f32 %v286, 1.442695
  %v293 = vpow.pop %v292
  %v294 = vmul.f32 %v287, 1.442695
  %v295 = vpow.pop %v294
  %v296 = vsel %vm65, %v289, 0.0
  %297 = vadd.xlane.f32.xlu0 %v296
  %v298 = vpop.xlane.xlu0 %297
  %v299 = vsel %vm65, %v291, 0.0
  %300 = vadd.xlane.f32.xlu0 %v299
  %v301 = vpop.xlane.xlu0 %300
  %v302 = vsel %vm65, %v293, 0.0
  %303 = vadd.xlane.f32.xlu0 %v302
  %v304 = vpop.xlane.xlu0 %303
  %v305 = vsel %vm65, %v295, 0.0
  %306 = vadd.xlane.f32.xlu0 %v305
  %v307 = vpop.xlane.xlu0 %306
  %v308 = vrcp.pop %v298
  %v309 = vrcp.pop %v301
  %v310 = vrcp.pop %v304
  %v311 = vrcp.pop %v307
  %v312 = vmul.f32 %v289, %v308
  %v313 = vmul.f32 %v291, %v309
  %v314 = vmul.f32 %v293, %v310
  %v315 = vmul.f32 %v295, %v311
  %v316 = vpack.c.bf16 %v313, %v312
  %v317 = vpack.c.bf16 %v315, %v314
  %318 = vrot.lane.b32.xlu0 %v232, 64
  %v319 = vpop.permute.xlu0 %318
  %320 = vrot.lane.b32.xlu0 %v233, 64
  %v321 = vpop.permute.xlu0 %320
  %v325 = vsel %vm65, %v316, 0
  %v328 = vsel %vm65, %v317, 0
  %330 = vmatpush.bf16.msra.mxu0 0
  %331 = vmatpush.bf16.msra.mxu0 0
  %332 = vmatpush.bf16.msra.mxu0 0
  %333 = vmatpush.bf16.msra.mxu0 0
  %334 = vmatpush.bf16.msra.mxu0 0
  %335 = vmatpush.bf16.msra.mxu0 0
  %336 = vmatpush.bf16.msra.mxu0 %v321
  %337 = vmatpush.bf16.msra.mxu0 %v319
  %338 = vmatmul.bf16.gmra.mxu0 %v325
  %v339 = vpop.f32.mrf.mxu0
  %v340 = vadd.f32 0.0, %v339
  %v341 = vpop.f32.mrf.mxu0
  %v342 = vadd.f32 0.0, %v341
  %343 = vmatmul.bf16.gmra.mxu0 %v328
  %v344 = vpop.f32.mrf.mxu0
  %v345 = vadd.f32 0.0, %v344
  %v346 = vpop.f32.mrf.mxu0
  %v347 = vadd.f32 0.0, %v346
  %348 = vdwg.mxu0
  %v349 = vpack.c.bf16 %v342, %v340
  %v350 = vpack.c.bf16 %v347, %v345
  %353 = vrot.lane.b32.xlu0 %v230, 112
  %v354 = vpop.permute.xlu0 %353
  %355 = vrot.lane.b32.xlu0 %v231, 112
  %v356 = vpop.permute.xlu0 %355
  %357 = vrot.lane.b32.xlu0 %v232, 80
  %v358 = vpop.permute.xlu0 %357
  %359 = vrot.lane.b32.xlu0 %v233, 80
  %v360 = vpop.permute.xlu0 %359
  %v362 = vsel %vm240, %v354, 0
  %v365 = vsel %vm240, %v356, 0
  %v368 = vsel %vm240, %v358, 0
  %v371 = vsel %vm240, %v360, 0
  %373 = vmatpush.bf16.xpose.msra.mxu0 0
  %374 = vmatpush.bf16.xpose.msra.mxu0 0
  %375 = vmatpush.bf16.xpose.msra.mxu0 0
  %376 = vmatpush.bf16.xpose.msra.mxu0 0
  %377 = vmatpush.bf16.xpose.msra.mxu0 0
  %378 = vmatpush.bf16.xpose.msra.mxu0 0
  %379 = vmatpush.bf16.xpose.msra.mxu0 %v371
  %380 = vmatpush.bf16.xpose.msra.mxu0 %v368
  %381 = vmatmul.bf16.gmra.mxu0 %v362
  %v382 = vpop.f32.mrf.mxu0
  %v383 = vadd.f32 %v171, %v382
  %v384 = vpop.f32.mrf.mxu0
  %v385 = vadd.f32 %v172, %v384
  %386 = vmatmul.bf16.gmra.mxu0 %v365
  %v387 = vpop.f32.mrf.mxu0
  %v388 = vadd.f32 %v173, %v387
  %v389 = vpop.f32.mrf.mxu0
  %v390 = vadd.f32 %v174, %v389
  %391 = vdwg.mxu0
  %v392 = vsel %vm65, %v383, -inf
  %393 = vmax.xlane.f32.xlu0 %v392
  %v394 = vpop.xlane.xlu0 %393
  %v395 = vsel %vm65, %v385, -inf
  %396 = vmax.xlane.f32.xlu0 %v395
  %v397 = vpop.xlane.xlu0 %396
  %v398 = vsel %vm65, %v388, -inf
  %399 = vmax.xlane.f32.xlu0 %v398
  %v400 = vpop.xlane.xlu0 %399
  %v401 = vsel %vm65, %v390, -inf
  %402 = vmax.xlane.f32.xlu0 %v401
  %v403 = vpop.xlane.xlu0 %402
  %v404 = vsub.f32 %v383, %v394
  %v405 = vsub.f32 %v385, %v397
  %v406 = vsub.f32 %v388, %v400
  %v407 = vsub.f32 %v390, %v403
  %v408 = vmul.f32 %v404, 1.442695
  %v409 = vpow.pop %v408
  %v410 = vmul.f32 %v405, 1.442695
  %v411 = vpow.pop %v410
  %v412 = vmul.f32 %v406, 1.442695
  %v413 = vpow.pop %v412
  %v414 = vmul.f32 %v407, 1.442695
  %v415 = vpow.pop %v414
  %v416 = vsel %vm65, %v409, 0.0
  %417 = vadd.xlane.f32.xlu0 %v416
  %v418 = vpop.xlane.xlu0 %417
  %v419 = vsel %vm65, %v411, 0.0
  %420 = vadd.xlane.f32.xlu0 %v419
  %v421 = vpop.xlane.xlu0 %420
  %v422 = vsel %vm65, %v413, 0.0
  %423 = vadd.xlane.f32.xlu0 %v422
  %v424 = vpop.xlane.xlu0 %423
  %v425 = vsel %vm65, %v415, 0.0
  %426 = vadd.xlane.f32.xlu0 %v425
  %v427 = vpop.xlane.xlu0 %426
  %v428 = vrcp.pop %v418
  %v429 = vrcp.pop %v421
  %v430 = vrcp.pop %v424
  %v431 = vrcp.pop %v427
  %v432 = vmul.f32 %v409, %v428
  %v433 = vmul.f32 %v411, %v429
  %v434 = vmul.f32 %v413, %v430
  %v435 = vmul.f32 %v415, %v431
  %v436 = vpack.c.bf16 %v433, %v432
  %v437 = vpack.c.bf16 %v435, %v434
  %438 = vrot.lane.b32.xlu0 %v232, 48
  %v439 = vpop.permute.xlu0 %438
  %440 = vrot.lane.b32.xlu0 %v233, 48
  %v441 = vpop.permute.xlu0 %440
  %v445 = vsel %vm65, %v436, 0
  %v448 = vsel %vm65, %v437, 0
  %450 = vmatpush.bf16.msra.mxu0 0
  %451 = vmatpush.bf16.msra.mxu0 0
  %452 = vmatpush.bf16.msra.mxu0 0
  %453 = vmatpush.bf16.msra.mxu0 0
  %454 = vmatpush.bf16.msra.mxu0 0
  %455 = vmatpush.bf16.msra.mxu0 0
  %456 = vmatpush.bf16.msra.mxu0 %v441
  %457 = vmatpush.bf16.msra.mxu0 %v439
  %458 = vmatmul.bf16.gmra.mxu0 %v445
  %v459 = vpop.f32.mrf.mxu0
  %v460 = vadd.f32 0.0, %v459
  %v461 = vpop.f32.mrf.mxu0
  %v462 = vadd.f32 0.0, %v461
  %463 = vmatmul.bf16.gmra.mxu0 %v448
  %v464 = vpop.f32.mrf.mxu0
  %v465 = vadd.f32 0.0, %v464
  %v466 = vpop.f32.mrf.mxu0
  %v467 = vadd.f32 0.0, %v466
  %468 = vdwg.mxu0
  %v469 = vpack.c.bf16 %v462, %v460
  %v470 = vpack.c.bf16 %v467, %v465
  %v473 = vunpack.c.l.b16 %v224
  %v474 = vunpack.c.l.b16 %v225
  %v475 = vpack.c.b16 %v474, %v473
  %v478 = vsel %vm240, %v469, 0
  %v481 = vsel %vm240, %v470, 0
  %483 = vmatpush.bf16.msra.mxu0 0
  %484 = vmatpush.bf16.msra.mxu0 0
  %485 = vmatpush.bf16.msra.mxu0 0
  %486 = vmatpush.bf16.msra.mxu0 0
  %487 = vmatpush.bf16.msra.mxu0 0
  %488 = vmatpush.bf16.msra.mxu0 0
  %489 = vmatpush.bf16.msra.mxu0 0
  %490 = vmatpush.bf16.msra.mxu0 %v475
  %491 = vmatmul.bf16.gmra.mxu0 %v478
  %v492 = vpop.f32.mrf.mxu0
  %v493 = vadd.f32 0.0, %v492
  %v494 = vpop.f32.mrf.mxu0
  %v495 = vadd.f32 0.0, %v494
  %496 = vmatmul.bf16.gmra.mxu0 %v481
  %v497 = vpop.f32.mrf.mxu0
  %v498 = vadd.f32 0.0, %v497
  %v499 = vpop.f32.mrf.mxu0
  %v500 = vadd.f32 0.0, %v499
  %501 = vdwg.mxu0
  %v504 = vunpack.c.l.b16 %v222
  %v505 = vunpack.c.l.b16 %v223
  %v506 = vpack.c.b16 %v505, %v504
  %v509 = vsel %vm240, %v349, 0
  %v512 = vsel %vm240, %v350, 0
  %514 = vmatpush.bf16.msra.mxu0 0
  %515 = vmatpush.bf16.msra.mxu0 0
  %516 = vmatpush.bf16.msra.mxu0 0
  %517 = vmatpush.bf16.msra.mxu0 0
  %518 = vmatpush.bf16.msra.mxu0 0
  %519 = vmatpush.bf16.msra.mxu0 0
  %520 = vmatpush.bf16.msra.mxu0 0
  %521 = vmatpush.bf16.msra.mxu0 %v506
  %522 = vmatmul.bf16.gmra.mxu0 %v509
  %v523 = vpop.f32.mrf.mxu0
  %v524 = vadd.f32 %v493, %v523
  %v525 = vpop.f32.mrf.mxu0
  %v526 = vadd.f32 %v495, %v525
  %527 = vmatmul.bf16.gmra.mxu0 %v512
  %v528 = vpop.f32.mrf.mxu0
  %v529 = vadd.f32 %v498, %v528
  %v530 = vpop.f32.mrf.mxu0
  %v531 = vadd.f32 %v500, %v530
  %532 = vdwg.mxu0
  %v533 = vld [vmem:[%s7] sm:$0x1]
  %v535 = vperm.slane %v533, 0
  %v537 = vadd.f32 %v524, %v535
  %v538 = vadd.f32 %v526, %v535
  %v539 = vadd.f32 %v529, %v535
  %v540 = vadd.f32 %v531, %v535
  %v541 = vld [vmem:[%s8] sm:$0x3]
  %v542 = vadd.f32 %v167, %v537
  %v543 = vadd.f32 %v168, %v538
  %v544 = vadd.f32 %v169, %v539
  %v545 = vadd.f32 %v170, %v540
  %v546 = vsel %vm65, %v542, 0.0
  %547 = vadd.xlane.f32.xlu0 %v546
  %v548 = vpop.xlane.xlu0 %547
  %v549 = vsel %vm65, %v543, 0.0
  %550 = vadd.xlane.f32.xlu0 %v549
  %v551 = vpop.xlane.xlu0 %550
  %v552 = vsel %vm65, %v544, 0.0
  %553 = vadd.xlane.f32.xlu0 %v552
  %v554 = vpop.xlane.xlu0 %553
  %v555 = vsel %vm65, %v545, 0.0
  %556 = vadd.xlane.f32.xlu0 %v555
  %v557 = vpop.xlane.xlu0 %556
  %v558 = vmul.f32 %v548, %v84
  %v559 = vmul.f32 %v551, %v84
  %v560 = vmul.f32 %v554, %v84
  %v561 = vmul.f32 %v557, %v84
  %v562 = vsub.f32 %v542, %v558
  %v563 = vsub.f32 %v543, %v559
  %v564 = vsub.f32 %v544, %v560
  %v565 = vsub.f32 %v545, %v561
  %v566 = vmul.f32 %v562, %v562
  %v567 = vmul.f32 %v563, %v563
  %v568 = vmul.f32 %v564, %v564
  %v569 = vmul.f32 %v565, %v565
  %v570 = vsel %vm65, %v566, 0.0
  %571 = vadd.xlane.f32.xlu0 %v570
  %v572 = vpop.xlane.xlu0 %571
  %v573 = vsel %vm65, %v567, 0.0
  %574 = vadd.xlane.f32.xlu0 %v573
  %v575 = vpop.xlane.xlu0 %574
  %v576 = vsel %vm65, %v568, 0.0
  %577 = vadd.xlane.f32.xlu0 %v576
  %v578 = vpop.xlane.xlu0 %577
  %v579 = vsel %vm65, %v569, 0.0
  %580 = vadd.xlane.f32.xlu0 %v579
  %v581 = vpop.xlane.xlu0 %580
  %v582 = vmul.f32 %v572, %v84
  %v583 = vmul.f32 %v575, %v84
  %v584 = vmul.f32 %v578, %v84
  %v585 = vmul.f32 %v581, %v84
  %v586 = vadd.f32 %v582, 1e-12
  %v587 = vadd.f32 %v583, 1e-12
  %v588 = vadd.f32 %v584, 1e-12
  %v589 = vadd.f32 %v585, 1e-12
  %v590 = vrsqrt.pop %v586
  %v591 = vmul.f32 %v590, %v586
  %v592 = vmul.f32 %v591, %v590
  %v593 = vmul.f32 0.5, %v592
  %v594 = vsub.f32 1.5, %v593
  %v595 = vmul.f32 %v590, %v594
  %vm596 = vweird.f32 %v586
  %vm597 = vweird.f32 %v590
  %vm598 = vmor %vm596, %vm597
  %v599 = vsel %vm598, %v590, %v595
  %v600 = vrsqrt.pop %v587
  %v601 = vmul.f32 %v600, %v587
  %v602 = vmul.f32 %v601, %v600
  %v603 = vmul.f32 0.5, %v602
  %v604 = vsub.f32 1.5, %v603
  %v605 = vmul.f32 %v600, %v604
  %vm606 = vweird.f32 %v587
  %vm607 = vweird.f32 %v600
  %vm608 = vmor %vm606, %vm607
  %v609 = vsel %vm608, %v600, %v605
  %v610 = vrsqrt.pop %v588
  %v611 = vmul.f32 %v610, %v588
  %v612 = vmul.f32 %v611, %v610
  %v613 = vmul.f32 0.5, %v612
  %v614 = vsub.f32 1.5, %v613
  %v615 = vmul.f32 %v610, %v614
  %vm616 = vweird.f32 %v588
  %vm617 = vweird.f32 %v610
  %vm618 = vmor %vm616, %vm617
  %v619 = vsel %vm618, %v610, %v615
  %v620 = vrsqrt.pop %v589
  %v621 = vmul.f32 %v620, %v589
  %v622 = vmul.f32 %v621, %v620
  %v623 = vmul.f32 0.5, %v622
  %v624 = vsub.f32 1.5, %v623
  %v625 = vmul.f32 %v620, %v624
  %vm626 = vweird.f32 %v589
  %vm627 = vweird.f32 %v620
  %vm628 = vmor %vm626, %vm627
  %v629 = vsel %vm628, %v620, %v625
  %v630 = vmul.f32 %v562, %v599
  %v631 = vmul.f32 %v563, %v609
  %v632 = vmul.f32 %v564, %v619
  %v633 = vmul.f32 %v565, %v629
  %v634 = vperm.slane %v541, 0
  %v635 = vmul.f32 %v630, %v634
  %v636 = vmul.f32 %v631, %v634
  %v637 = vmul.f32 %v632, %v634
  %v638 = vmul.f32 %v633, %v634
  %v639 = vperm.slane %v541, 1
  %v640 = vadd.f32 %v635, %v639
  %v641 = vadd.f32 %v636, %v639
  %v642 = vadd.f32 %v637, %v639
  %v643 = vadd.f32 %v638, %v639
  %v644 = vld [vmem:[%s9] sm:$0xf]
  %v645 = vld [vmem:[%s9 + $0x4] sm:$0xf]
  %v646 = vld [vmem:[%s9 + $0x8] sm:$0xf]
  %v647 = vld [vmem:[%s9 + $0xc] sm:$0xf]
  %v648 = vpack.c.bf16 %v641, %v640
  %v649 = vpack.c.bf16 %v643, %v642
  %v650 = vld [vmem:[%s10] sm:$0x1]
  %v652 = vperm.slane %v650, 0
  %v658 = vunpack.c.l.b16 %v644
  %v659 = vunpack.c.l.b16 %v645
  %v660 = vunpack.c.l.b16 %v646
  %v661 = vunpack.c.l.b16 %v647
  %v662 = vpack.c.b16 %v659, %v658
  %v663 = vpack.c.b16 %v661, %v660
  %v667 = vsel %vm65, %v648, 0
  %v670 = vsel %vm65, %v649, 0
  %672 = vmatpush.bf16.msra.mxu0 0
  %673 = vmatpush.bf16.msra.mxu0 0
  %674 = vmatpush.bf16.msra.mxu0 0
  %675 = vmatpush.bf16.msra.mxu0 0
  %676 = vmatpush.bf16.msra.mxu0 0
  %677 = vmatpush.bf16.msra.mxu0 0
  %678 = vmatpush.bf16.msra.mxu0 %v663
  %679 = vmatpush.bf16.msra.mxu0 %v662
  %680 = vmatmul.bf16.gmra.mxu0 %v667
  %v681 = vpop.f32.mrf.mxu0
  %v682 = vadd.f32 %v652, %v681
  %v683 = vpop.f32.mrf.mxu0
  %v684 = vadd.f32 %v652, %v683
  %685 = vmatmul.bf16.gmra.mxu0 %v670
  %v686 = vpop.f32.mrf.mxu0
  %v687 = vadd.f32 %v652, %v686
  %v688 = vpop.f32.mrf.mxu0
  %v689 = vadd.f32 %v652, %v688
  %690 = vdwg.mxu0
  %v691 = vmul.f32 %v682, %v682
  %v692 = vmul.f32 %v684, %v684
  %v693 = vmul.f32 %v687, %v687
  %v694 = vmul.f32 %v689, %v689
  %v695 = vmul.f32 %v682, %v691
  %v696 = vmul.f32 %v684, %v692
  %v697 = vmul.f32 %v687, %v693
  %v698 = vmul.f32 %v689, %v694
  %v699 = vmul.f32 %v695, 0.044715
  %v700 = vmul.f32 %v696, 0.044715
  %v701 = vmul.f32 %v697, 0.044715
  %v702 = vmul.f32 %v698, 0.044715
  %v703 = vadd.f32 %v682, %v699
  %v704 = vadd.f32 %v684, %v700
  %v705 = vadd.f32 %v687, %v701
  %v706 = vadd.f32 %v689, %v702
  %v707 = vmul.f32 %v703, 0.7978846
  %v708 = vmul.f32 %v704, 0.7978846
  %v709 = vmul.f32 %v705, 0.7978846
  %v710 = vmul.f32 %v706, 0.7978846
  %v711 = vtanh.pop %v707
  %v712 = vtanh.pop %v708
  %v713 = vtanh.pop %v709
  %v714 = vtanh.pop %v710
  %v715 = vadd.f32 %v711, 1.0
  %v716 = vadd.f32 %v712, 1.0
  %v717 = vadd.f32 %v713, 1.0
  %v718 = vadd.f32 %v714, 1.0
  %v719 = vmul.f32 %v715, 0.5
  %v720 = vmul.f32 %v716, 0.5
  %v721 = vmul.f32 %v717, 0.5
  %v722 = vmul.f32 %v718, 0.5
  %v723 = vmul.f32 %v682, %v719
  %v724 = vmul.f32 %v684, %v720
  %v725 = vmul.f32 %v687, %v721
  %v726 = vmul.f32 %v689, %v722
  %v727 = vld [vmem:[%s11] sm:$0xf]
  %v728 = vld [vmem:[%s11 + $0x4] sm:$0xf]
  %v729 = vld [vmem:[%s11 + $0x8] sm:$0xf]
  %v730 = vld [vmem:[%s11 + $0xc] sm:$0xf]
  %v731 = vld [vmem:[%s11 + $0x10] sm:$0xf]
  %v732 = vld [vmem:[%s11 + $0x14] sm:$0xf]
  %v733 = vld [vmem:[%s11 + $0x18] sm:$0xf]
  %v734 = vld [vmem:[%s11 + $0x1c] sm:$0xf]
  %v735 = vpack.c.bf16 %v724, %v723
  %v736 = vpack.c.bf16 %v726, %v725
  %v737 = vld [vmem:[%s12] sm:$0x1]
  %v739 = vperm.slane %v737, 0
  %v749 = vunpack.c.l.b16 %v727
  %v750 = vunpack.c.l.b16 %v728
  %v751 = vunpack.c.l.b16 %v729
  %v752 = vunpack.c.l.b16 %v730
  %v753 = vunpack.c.l.b16 %v731
  %v754 = vunpack.c.l.b16 %v732
  %v755 = vunpack.c.l.b16 %v733
  %v756 = vunpack.c.l.b16 %v734
  %v757 = vpack.c.b16 %v750, %v749
  %v758 = vpack.c.b16 %v752, %v751
  %v759 = vpack.c.b16 %v754, %v753
  %v760 = vpack.c.b16 %v756, %v755
  %vm765 = vcmask 523264
  %v767 = vsel %vm765, %v735, 0
  %v770 = vsel %vm765, %v736, 0
  %772 = vmatpush.bf16.msra.mxu0 0
  %773 = vmatpush.bf16.msra.mxu0 0
  %774 = vmatpush.bf16.msra.mxu0 0
  %775 = vmatpush.bf16.msra.mxu0 0
  %776 = vmatpush.bf16.msra.mxu0 %v760
  %777 = vmatpush.bf16.msra.mxu0 %v759
  %778 = vmatpush.bf16.msra.mxu0 %v758
  %779 = vmatpush.bf16.msra.mxu0 %v757
  %780 = vmatmul.bf16.gmra.mxu0 %v767
  %v781 = vpop.f32.mrf.mxu0
  %v782 = vadd.f32 %v739, %v781
  %v783 = vpop.f32.mrf.mxu0
  %v784 = vadd.f32 %v739, %v783
  %785 = vmatmul.bf16.gmra.mxu0 %v770
  %v786 = vpop.f32.mrf.mxu0
  %v787 = vadd.f32 %v739, %v786
  %v788 = vpop.f32.mrf.mxu0
  %v789 = vadd.f32 %v739, %v788
  %790 = vdwg.mxu0
  %v791 = vld [vmem:[%s13] sm:$0x3]
  %v792 = vadd.f32 %v640, %v782
  %v793 = vadd.f32 %v641, %v784
  %v794 = vadd.f32 %v642, %v787
  %v795 = vadd.f32 %v643, %v789
  %v796 = vsel %vm65, %v792, 0.0
  %797 = vadd.xlane.f32.xlu0 %v796
  %v798 = vpop.xlane.xlu0 %797
  %v799 = vsel %vm65, %v793, 0.0
  %800 = vadd.xlane.f32.xlu0 %v799
  %v801 = vpop.xlane.xlu0 %800
  %v802 = vsel %vm65, %v794, 0.0
  %803 = vadd.xlane.f32.xlu0 %v802
  %v804 = vpop.xlane.xlu0 %803
  %v805 = vsel %vm65, %v795, 0.0
  %806 = vadd.xlane.f32.xlu0 %v805
  %v807 = vpop.xlane.xlu0 %806
  %v808 = vmul.f32 %v798, %v84
  %v809 = vmul.f32 %v801, %v84
  %v810 = vmul.f32 %v804, %v84
  %v811 = vmul.f32 %v807, %v84
  %v812 = vsub.f32 %v792, %v808
  %v813 = vsub.f32 %v793, %v809
  %v814 = vsub.f32 %v794, %v810
  %v815 = vsub.f32 %v795, %v811
  %v816 = vmul.f32 %v812, %v812
  %v817 = vmul.f32 %v813, %v813
  %v818 = vmul.f32 %v814, %v814
  %v819 = vmul.f32 %v815, %v815
  %v820 = vsel %vm65, %v816, 0.0
  %821 = vadd.xlane.f32.xlu0 %v820
  %v822 = vpop.xlane.xlu0 %821
  %v823 = vsel %vm65, %v817, 0.0
  %824 = vadd.xlane.f32.xlu0 %v823
  %v825 = vpop.xlane.xlu0 %824
  %v826 = vsel %vm65, %v818, 0.0
  %827 = vadd.xlane.f32.xlu0 %v826
  %v828 = vpop.xlane.xlu0 %827
  %v829 = vsel %vm65, %v819, 0.0
  %830 = vadd.xlane.f32.xlu0 %v829
  %v831 = vpop.xlane.xlu0 %830
  %v832 = vmul.f32 %v822, %v84
  %v833 = vmul.f32 %v825, %v84
  %v834 = vmul.f32 %v828, %v84
  %v835 = vmul.f32 %v831, %v84
  %v836 = vadd.f32 %v832, 1e-12
  %v837 = vadd.f32 %v833, 1e-12
  %v838 = vadd.f32 %v834, 1e-12
  %v839 = vadd.f32 %v835, 1e-12
  %v840 = vrsqrt.pop %v836
  %v841 = vmul.f32 %v840, %v836
  %v842 = vmul.f32 %v841, %v840
  %v843 = vmul.f32 0.5, %v842
  %v844 = vsub.f32 1.5, %v843
  %v845 = vmul.f32 %v840, %v844
  %vm846 = vweird.f32 %v836
  %vm847 = vweird.f32 %v840
  %vm848 = vmor %vm846, %vm847
  %v849 = vsel %vm848, %v840, %v845
  %v850 = vrsqrt.pop %v837
  %v851 = vmul.f32 %v850, %v837
  %v852 = vmul.f32 %v851, %v850
  %v853 = vmul.f32 0.5, %v852
  %v854 = vsub.f32 1.5, %v853
  %v855 = vmul.f32 %v850, %v854
  %vm856 = vweird.f32 %v837
  %vm857 = vweird.f32 %v850
  %vm858 = vmor %vm856, %vm857
  %v859 = vsel %vm858, %v850, %v855
  %v860 = vrsqrt.pop %v838
  %v861 = vmul.f32 %v860, %v838
  %v862 = vmul.f32 %v861, %v860
  %v863 = vmul.f32 0.5, %v862
  %v864 = vsub.f32 1.5, %v863
  %v865 = vmul.f32 %v860, %v864
  %vm866 = vweird.f32 %v838
  %vm867 = vweird.f32 %v860
  %vm868 = vmor %vm866, %vm867
  %v869 = vsel %vm868, %v860, %v865
  %v870 = vrsqrt.pop %v839
  %v871 = vmul.f32 %v870, %v839
  %v872 = vmul.f32 %v871, %v870
  %v873 = vmul.f32 0.5, %v872
  %v874 = vsub.f32 1.5, %v873
  %v875 = vmul.f32 %v870, %v874
  %vm876 = vweird.f32 %v839
  %vm877 = vweird.f32 %v870
  %vm878 = vmor %vm876, %vm877
  %v879 = vsel %vm878, %v870, %v875
  %v880 = vmul.f32 %v812, %v849
  %v881 = vmul.f32 %v813, %v859
  %v882 = vmul.f32 %v814, %v869
  %v883 = vmul.f32 %v815, %v879
  %v884 = vperm.slane %v791, 0
  %v885 = vmul.f32 %v880, %v884
  %v886 = vmul.f32 %v881, %v884
  %v887 = vmul.f32 %v882, %v884
  %v888 = vmul.f32 %v883, %v884
  %v889 = vperm.slane %v791, 1
  %v890 = vadd.f32 %v885, %v889
  %v891 = vadd.f32 %v886, %v889
  %v892 = vadd.f32 %v887, %v889
  %v893 = vadd.f32 %v888, %v889
  %s894 = scalar_lea.vmem %s4, 16
  %v895 = vld [vmem:[%s894] sm:$0xf]
  %v896 = vld [vmem:[%s894 + $0x4] sm:$0xf]
  %v897 = vld [vmem:[%s894 + $0x8] sm:$0xf]
  %v898 = vld [vmem:[%s894 + $0xc] sm:$0xf]
  %v899 = vpack.c.bf16 %v891, %v890
  %v900 = vpack.c.bf16 %v893, %v892
  %s901 = scalar_lea.vmem %s5, 1
  %v902 = vld [vmem:[%s901] sm:$0x1]
  %v904 = vperm.slane %v902, 0
  %v910 = vunpack.c.l.b16 %v895
  %v911 = vunpack.c.l.b16 %v896
  %v912 = vunpack.c.l.b16 %v897
  %v913 = vunpack.c.l.b16 %v898
  %v914 = vpack.c.b16 %v911, %v910
  %v915 = vpack.c.b16 %v913, %v912
  %v919 = vsel %vm65, %v899, 0
  %v922 = vsel %vm65, %v900, 0
  %924 = vmatpush.bf16.msra.mxu0 0
  %925 = vmatpush.bf16.msra.mxu0 0
  %926 = vmatpush.bf16.msra.mxu0 0
  %927 = vmatpush.bf16.msra.mxu0 0
  %928 = vmatpush.bf16.msra.mxu0 0
  %929 = vmatpush.bf16.msra.mxu0 0
  %930 = vmatpush.bf16.msra.mxu0 %v915
  %931 = vmatpush.bf16.msra.mxu0 %v914
  %932 = vmatmul.bf16.gmra.mxu0 %v919
  %v933 = vpop.f32.mrf.mxu0
  %v934 = vadd.f32 %v904, %v933
  %v935 = vpop.f32.mrf.mxu0
  %v936 = vadd.f32 %v904, %v935
  %937 = vmatmul.bf16.gmra.mxu0 %v922
  %v938 = vpop.f32.mrf.mxu0
  %v939 = vadd.f32 %v904, %v938
  %v940 = vpop.f32.mrf.mxu0
  %v941 = vadd.f32 %v904, %v940
  %942 = vdwg.mxu0
  %s943 = scalar_lea.vmem %s6, 16
  %v944 = vld [vmem:[%s943] sm:$0xf]
  %v945 = vld [vmem:[%s943 + $0x4] sm:$0xf]
  %v946 = vld [vmem:[%s943 + $0x8] sm:$0xf]
  %v947 = vld [vmem:[%s943 + $0xc] sm:$0xf]
  %v948 = vmul.f32 %v934, 0.25
  %v949 = vmul.f32 %v936, 0.25
  %v950 = vmul.f32 %v939, 0.25
  %v951 = vmul.f32 %v941, 0.25
  %v952 = vpack.c.bf16 %v949, %v948
  %v953 = vpack.c.bf16 %v951, %v950
  %v954 = vpack.c.bf16 %v936, %v934
  %v955 = vpack.c.bf16 %v941, %v939
  %958 = vrot.lane.b32.xlu0 %v954, 96
  %v959 = vpop.permute.xlu0 %958
  %960 = vrot.lane.b32.xlu0 %v955, 96
  %v961 = vpop.permute.xlu0 %960
  %v963 = vsel %vm240, %v952, 0
  %v966 = vsel %vm240, %v953, 0
  %v969 = vsel %vm240, %v959, 0
  %v972 = vsel %vm240, %v961, 0
  %974 = vmatpush.bf16.xpose.msra.mxu0 0
  %975 = vmatpush.bf16.xpose.msra.mxu0 0
  %976 = vmatpush.bf16.xpose.msra.mxu0 0
  %977 = vmatpush.bf16.xpose.msra.mxu0 0
  %978 = vmatpush.bf16.xpose.msra.mxu0 0
  %979 = vmatpush.bf16.xpose.msra.mxu0 0
  %980 = vmatpush.bf16.xpose.msra.mxu0 %v972
  %981 = vmatpush.bf16.xpose.msra.mxu0 %v969
  %982 = vmatmul.bf16.gmra.mxu0 %v963
  %v983 = vpop.f32.mrf.mxu0
  %v984 = vadd.f32 %v171, %v983
  %v985 = vpop.f32.mrf.mxu0
  %v986 = vadd.f32 %v172, %v985
  %987 = vmatmul.bf16.gmra.mxu0 %v966
  %v988 = vpop.f32.mrf.mxu0
  %v989 = vadd.f32 %v173, %v988
  %v990 = vpop.f32.mrf.mxu0
  %v991 = vadd.f32 %v174, %v990
  %992 = vdwg.mxu0
  %v993 = vsel %vm65, %v984, -inf
  %994 = vmax.xlane.f32.xlu0 %v993
  %v995 = vpop.xlane.xlu0 %994
  %v996 = vsel %vm65, %v986, -inf
  %997 = vmax.xlane.f32.xlu0 %v996
  %v998 = vpop.xlane.xlu0 %997
  %v999 = vsel %vm65, %v989, -inf
  %1000 = vmax.xlane.f32.xlu0 %v999
  %v1001 = vpop.xlane.xlu0 %1000
  %v1002 = vsel %vm65, %v991, -inf
  %1003 = vmax.xlane.f32.xlu0 %v1002
  %v1004 = vpop.xlane.xlu0 %1003
  %v1005 = vsub.f32 %v984, %v995
  %v1006 = vsub.f32 %v986, %v998
  %v1007 = vsub.f32 %v989, %v1001
  %v1008 = vsub.f32 %v991, %v1004
  %v1009 = vmul.f32 %v1005, 1.442695
  %v1010 = vpow.pop %v1009
  %v1011 = vmul.f32 %v1006, 1.442695
  %v1012 = vpow.pop %v1011
  %v1013 = vmul.f32 %v1007, 1.442695
  %v1014 = vpow.pop %v1013
  %v1015 = vmul.f32 %v1008, 1.442695
  %v1016 = vpow.pop %v1015
  %v1017 = vsel %vm65, %v1010, 0.0
  %1018 = vadd.xlane.f32.xlu0 %v1017
  %v1019 = vpop.xlane.xlu0 %1018
  %v1020 = vsel %vm65, %v1012, 0.0
  %1021 = vadd.xlane.f32.xlu0 %v1020
  %v1022 = vpop.xlane.xlu0 %1021
  %v1023 = vsel %vm65, %v1014, 0.0
  %1024 = vadd.xlane.f32.xlu0 %v1023
  %v1025 = vpop.xlane.xlu0 %1024
  %v1026 = vsel %vm65, %v1016, 0.0
  %1027 = vadd.xlane.f32.xlu0 %v1026
  %v1028 = vpop.xlane.xlu0 %1027
  %v1029 = vrcp.pop %v1019
  %v1030 = vrcp.pop %v1022
  %v1031 = vrcp.pop %v1025
  %v1032 = vrcp.pop %v1028
  %v1033 = vmul.f32 %v1010, %v1029
  %v1034 = vmul.f32 %v1012, %v1030
  %v1035 = vmul.f32 %v1014, %v1031
  %v1036 = vmul.f32 %v1016, %v1032
  %v1037 = vpack.c.bf16 %v1034, %v1033
  %v1038 = vpack.c.bf16 %v1036, %v1035
  %1039 = vrot.lane.b32.xlu0 %v954, 64
  %v1040 = vpop.permute.xlu0 %1039
  %1041 = vrot.lane.b32.xlu0 %v955, 64
  %v1042 = vpop.permute.xlu0 %1041
  %v1046 = vsel %vm65, %v1037, 0
  %v1049 = vsel %vm65, %v1038, 0
  %1051 = vmatpush.bf16.msra.mxu0 0
  %1052 = vmatpush.bf16.msra.mxu0 0
  %1053 = vmatpush.bf16.msra.mxu0 0
  %1054 = vmatpush.bf16.msra.mxu0 0
  %1055 = vmatpush.bf16.msra.mxu0 0
  %1056 = vmatpush.bf16.msra.mxu0 0
  %1057 = vmatpush.bf16.msra.mxu0 %v1042
  %1058 = vmatpush.bf16.msra.mxu0 %v1040
  %1059 = vmatmul.bf16.gmra.mxu0 %v1046
  %v1060 = vpop.f32.mrf.mxu0
  %v1061 = vadd.f32 0.0, %v1060
  %v1062 = vpop.f32.mrf.mxu0
  %v1063 = vadd.f32 0.0, %v1062
  %1064 = vmatmul.bf16.gmra.mxu0 %v1049
  %v1065 = vpop.f32.mrf.mxu0
  %v1066 = vadd.f32 0.0, %v1065
  %v1067 = vpop.f32.mrf.mxu0
  %v1068 = vadd.f32 0.0, %v1067
  %1069 = vdwg.mxu0
  %v1070 = vpack.c.bf16 %v1063, %v1061
  %v1071 = vpack.c.bf16 %v1068, %v1066
  %1074 = vrot.lane.b32.xlu0 %v952, 112
  %v1075 = vpop.permute.xlu0 %1074
  %1076 = vrot.lane.b32.xlu0 %v953, 112
  %v1077 = vpop.permute.xlu0 %1076
  %1078 = vrot.lane.b32.xlu0 %v954, 80
  %v1079 = vpop.permute.xlu0 %1078
  %1080 = vrot.lane.b32.xlu0 %v955, 80
  %v1081 = vpop.permute.xlu0 %1080
  %v1083 = vsel %vm240, %v1075, 0
  %v1086 = vsel %vm240, %v1077, 0
  %v1089 = vsel %vm240, %v1079, 0
  %v1092 = vsel %vm240, %v1081, 0
  %1094 = vmatpush.bf16.xpose.msra.mxu0 0
  %1095 = vmatpush.bf16.xpose.msra.mxu0 0
  %1096 = vmatpush.bf16.xpose.msra.mxu0 0
  %1097 = vmatpush.bf16.xpose.msra.mxu0 0
  %1098 = vmatpush.bf16.xpose.msra.mxu0 0
  %1099 = vmatpush.bf16.xpose.msra.mxu0 0
  %1100 = vmatpush.bf16.xpose.msra.mxu0 %v1092
  %1101 = vmatpush.bf16.xpose.msra.mxu0 %v1089
  %1102 = vmatmul.bf16.gmra.mxu0 %v1083
  %v1103 = vpop.f32.mrf.mxu0
  %v1104 = vadd.f32 %v171, %v1103
  %v1105 = vpop.f32.mrf.mxu0
  %v1106 = vadd.f32 %v172, %v1105
  %1107 = vmatmul.bf16.gmra.mxu0 %v1086
  %v1108 = vpop.f32.mrf.mxu0
  %v1109 = vadd.f32 %v173, %v1108
  %v1110 = vpop.f32.mrf.mxu0
  %v1111 = vadd.f32 %v174, %v1110
  %1112 = vdwg.mxu0
  %v1113 = vsel %vm65, %v1104, -inf
  %1114 = vmax.xlane.f32.xlu0 %v1113
  %v1115 = vpop.xlane.xlu0 %1114
  %v1116 = vsel %vm65, %v1106, -inf
  %1117 = vmax.xlane.f32.xlu0 %v1116
  %v1118 = vpop.xlane.xlu0 %1117
  %v1119 = vsel %vm65, %v1109, -inf
  %1120 = vmax.xlane.f32.xlu0 %v1119
  %v1121 = vpop.xlane.xlu0 %1120
  %v1122 = vsel %vm65, %v1111, -inf
  %1123 = vmax.xlane.f32.xlu0 %v1122
  %v1124 = vpop.xlane.xlu0 %1123
  %v1125 = vsub.f32 %v1104, %v1115
  %v1126 = vsub.f32 %v1106, %v1118
  %v1127 = vsub.f32 %v1109, %v1121
  %v1128 = vsub.f32 %v1111, %v1124
  %v1129 = vmul.f32 %v1125, 1.442695
  %v1130 = vpow.pop %v1129
  %v1131 = vmul.f32 %v1126, 1.442695
  %v1132 = vpow.pop %v1131
  %v1133 = vmul.f32 %v1127, 1.442695
  %v1134 = vpow.pop %v1133
  %v1135 = vmul.f32 %v1128, 1.442695
  %v1136 = vpow.pop %v1135
  %v1137 = vsel %vm65, %v1130, 0.0
  %1138 = vadd.xlane.f32.xlu0 %v1137
  %v1139 = vpop.xlane.xlu0 %1138
  %v1140 = vsel %vm65, %v1132, 0.0
  %1141 = vadd.xlane.f32.xlu0 %v1140
  %v1142 = vpop.xlane.xlu0 %1141
  %v1143 = vsel %vm65, %v1134, 0.0
  %1144 = vadd.xlane.f32.xlu0 %v1143
  %v1145 = vpop.xlane.xlu0 %1144
  %v1146 = vsel %vm65, %v1136, 0.0
  %1147 = vadd.xlane.f32.xlu0 %v1146
  %v1148 = vpop.xlane.xlu0 %1147
  %v1149 = vrcp.pop %v1139
  %v1150 = vrcp.pop %v1142
  %v1151 = vrcp.pop %v1145
  %v1152 = vrcp.pop %v1148
  %v1153 = vmul.f32 %v1130, %v1149
  %v1154 = vmul.f32 %v1132, %v1150
  %v1155 = vmul.f32 %v1134, %v1151
  %v1156 = vmul.f32 %v1136, %v1152
  %v1157 = vpack.c.bf16 %v1154, %v1153
  %v1158 = vpack.c.bf16 %v1156, %v1155
  %1159 = vrot.lane.b32.xlu0 %v954, 48
  %v1160 = vpop.permute.xlu0 %1159
  %1161 = vrot.lane.b32.xlu0 %v955, 48
  %v1162 = vpop.permute.xlu0 %1161
  %v1166 = vsel %vm65, %v1157, 0
  %v1169 = vsel %vm65, %v1158, 0
  %1171 = vmatpush.bf16.msra.mxu0 0
  %1172 = vmatpush.bf16.msra.mxu0 0
  %1173 = vmatpush.bf16.msra.mxu0 0
  %1174 = vmatpush.bf16.msra.mxu0 0
  %1175 = vmatpush.bf16.msra.mxu0 0
  %1176 = vmatpush.bf16.msra.mxu0 0
  %1177 = vmatpush.bf16.msra.mxu0 %v1162
  %1178 = vmatpush.bf16.msra.mxu0 %v1160
  %1179 = vmatmul.bf16.gmra.mxu0 %v1166
  %v1180 = vpop.f32.mrf.mxu0
  %v1181 = vadd.f32 0.0, %v1180
  %v1182 = vpop.f32.mrf.mxu0
  %v1183 = vadd.f32 0.0, %v1182
  %1184 = vmatmul.bf16.gmra.mxu0 %v1169
  %v1185 = vpop.f32.mrf.mxu0
  %v1186 = vadd.f32 0.0, %v1185
  %v1187 = vpop.f32.mrf.mxu0
  %v1188 = vadd.f32 0.0, %v1187
  %1189 = vdwg.mxu0
  %v1190 = vpack.c.bf16 %v1183, %v1181
  %v1191 = vpack.c.bf16 %v1188, %v1186
  %v1194 = vunpack.c.l.b16 %v946
  %v1195 = vunpack.c.l.b16 %v947
  %v1196 = vpack.c.b16 %v1195, %v1194
  %v1199 = vsel %vm240, %v1190, 0
  %v1202 = vsel %vm240, %v1191, 0
  %1204 = vmatpush.bf16.msra.mxu0 0
  %1205 = vmatpush.bf16.msra.mxu0 0
  %1206 = vmatpush.bf16.msra.mxu0 0
  %1207 = vmatpush.bf16.msra.mxu0 0
  %1208 = vmatpush.bf16.msra.mxu0 0
  %1209 = vmatpush.bf16.msra.mxu0 0
  %1210 = vmatpush.bf16.msra.mxu0 0
  %1211 = vmatpush.bf16.msra.mxu0 %v1196
  %1212 = vmatmul.bf16.gmra.mxu0 %v1199
  %v1213 = vpop.f32.mrf.mxu0
  %v1214 = vadd.f32 0.0, %v1213
  %v1215 = vpop.f32.mrf.mxu0
  %v1216 = vadd.f32 0.0, %v1215
  %1217 = vmatmul.bf16.gmra.mxu0 %v1202
  %v1218 = vpop.f32.mrf.mxu0
  %v1219 = vadd.f32 0.0, %v1218
  %v1220 = vpop.f32.mrf.mxu0
  %v1221 = vadd.f32 0.0, %v1220
  %1222 = vdwg.mxu0
  %v1225 = vunpack.c.l.b16 %v944
  %v1226 = vunpack.c.l.b16 %v945
  %v1227 = vpack.c.b16 %v1226, %v1225
  %v1230 = vsel %vm240, %v1070, 0
  %v1233 = vsel %vm240, %v1071, 0
  %1235 = vmatpush.bf16.msra.mxu0 0
  %1236 = vmatpush.bf16.msra.mxu0 0
  %1237 = vmatpush.bf16.msra.mxu0 0
  %1238 = vmatpush.bf16.msra.mxu0 0
  %1239 = vmatpush.bf16.msra.mxu0 0
  %1240 = vmatpush.bf16.msra.mxu0 0
  %1241 = vmatpush.bf16.msra.mxu0 0
  %1242 = vmatpush.bf16.msra.mxu0 %v1227
  %1243 = vmatmul.bf16.gmra.mxu0 %v1230
  %v1244 = vpop.f32.mrf.mxu0
  %v1245 = vadd.f32 %v1214, %v1244
  %v1246 = vpop.f32.mrf.mxu0
  %v1247 = vadd.f32 %v1216, %v1246
  %1248 = vmatmul.bf16.gmra.mxu0 %v1233
  %v1249 = vpop.f32.mrf.mxu0
  %v1250 = vadd.f32 %v1219, %v1249
  %v1251 = vpop.f32.mrf.mxu0
  %v1252 = vadd.f32 %v1221, %v1251
  %1253 = vdwg.mxu0
  %s1254 = scalar_lea.vmem %s7, 1
  %v1255 = vld [vmem:[%s1254] sm:$0x1]
  %v1257 = vperm.slane %v1255, 0
  %v1259 = vadd.f32 %v1245, %v1257
  %v1260 = vadd.f32 %v1247, %v1257
  %v1261 = vadd.f32 %v1250, %v1257
  %v1262 = vadd.f32 %v1252, %v1257
  %s1263 = scalar_lea.vmem %s8, 2
  %v1264 = vld [vmem:[%s1263] sm:$0x3]
  %v1265 = vadd.f32 %v890, %v1259
  %v1266 = vadd.f32 %v891, %v1260
  %v1267 = vadd.f32 %v892, %v1261
  %v1268 = vadd.f32 %v893, %v1262
  %v1269 = vsel %vm65, %v1265, 0.0
  %1270 = vadd.xlane.f32.xlu0 %v1269
  %v1271 = vpop.xlane.xlu0 %1270
  %v1272 = vsel %vm65, %v1266, 0.0
  %1273 = vadd.xlane.f32.xlu0 %v1272
  %v1274 = vpop.xlane.xlu0 %1273
  %v1275 = vsel %vm65, %v1267, 0.0
  %1276 = vadd.xlane.f32.xlu0 %v1275
  %v1277 = vpop.xlane.xlu0 %1276
  %v1278 = vsel %vm65, %v1268, 0.0
  %1279 = vadd.xlane.f32.xlu0 %v1278
  %v1280 = vpop.xlane.xlu0 %1279
  %v1281 = vmul.f32 %v1271, %v84
  %v1282 = vmul.f32 %v1274, %v84
  %v1283 = vmul.f32 %v1277, %v84
  %v1284 = vmul.f32 %v1280, %v84
  %v1285 = vsub.f32 %v1265, %v1281
  %v1286 = vsub.f32 %v1266, %v1282
  %v1287 = vsub.f32 %v1267, %v1283
  %v1288 = vsub.f32 %v1268, %v1284
  %v1289 = vmul.f32 %v1285, %v1285
  %v1290 = vmul.f32 %v1286, %v1286
  %v1291 = vmul.f32 %v1287, %v1287
  %v1292 = vmul.f32 %v1288, %v1288
  %v1293 = vsel %vm65, %v1289, 0.0
  %1294 = vadd.xlane.f32.xlu0 %v1293
  %v1295 = vpop.xlane.xlu0 %1294
  %v1296 = vsel %vm65, %v1290, 0.0
  %1297 = vadd.xlane.f32.xlu0 %v1296
  %v1298 = vpop.xlane.xlu0 %1297
  %v1299 = vsel %vm65, %v1291, 0.0
  %1300 = vadd.xlane.f32.xlu0 %v1299
  %v1301 = vpop.xlane.xlu0 %1300
  %v1302 = vsel %vm65, %v1292, 0.0
  %1303 = vadd.xlane.f32.xlu0 %v1302
  %v1304 = vpop.xlane.xlu0 %1303
  %v1305 = vmul.f32 %v1295, %v84
  %v1306 = vmul.f32 %v1298, %v84
  %v1307 = vmul.f32 %v1301, %v84
  %v1308 = vmul.f32 %v1304, %v84
  %v1309 = vadd.f32 %v1305, 1e-12
  %v1310 = vadd.f32 %v1306, 1e-12
  %v1311 = vadd.f32 %v1307, 1e-12
  %v1312 = vadd.f32 %v1308, 1e-12
  %v1313 = vrsqrt.pop %v1309
  %v1314 = vmul.f32 %v1313, %v1309
  %v1315 = vmul.f32 %v1314, %v1313
  %v1316 = vmul.f32 0.5, %v1315
  %v1317 = vsub.f32 1.5, %v1316
  %v1318 = vmul.f32 %v1313, %v1317
  %vm1319 = vweird.f32 %v1309
  %vm1320 = vweird.f32 %v1313
  %vm1321 = vmor %vm1319, %vm1320
  %v1322 = vsel %vm1321, %v1313, %v1318
  %v1323 = vrsqrt.pop %v1310
  %v1324 = vmul.f32 %v1323, %v1310
  %v1325 = vmul.f32 %v1324, %v1323
  %v1326 = vmul.f32 0.5, %v1325
  %v1327 = vsub.f32 1.5, %v1326
  %v1328 = vmul.f32 %v1323, %v1327
  %vm1329 = vweird.f32 %v1310
  %vm1330 = vweird.f32 %v1323
  %vm1331 = vmor %vm1329, %vm1330
  %v1332 = vsel %vm1331, %v1323, %v1328
  %v1333 = vrsqrt.pop %v1311
  %v1334 = vmul.f32 %v1333, %v1311
  %v1335 = vmul.f32 %v1334, %v1333
  %v1336 = vmul.f32 0.5, %v1335
  %v1337 = vsub.f32 1.5, %v1336
  %v1338 = vmul.f32 %v1333, %v1337
  %vm1339 = vweird.f32 %v1311
  %vm1340 = vweird.f32 %v1333
  %vm1341 = vmor %vm1339, %vm1340
  %v1342 = vsel %vm1341, %v1333, %v1338
  %v1343 = vrsqrt.pop %v1312
  %v1344 = vmul.f32 %v1343, %v1312
  %v1345 = vmul.f32 %v1344, %v1343
  %v1346 = vmul.f32 0.5, %v1345
  %v1347 = vsub.f32 1.5, %v1346
  %v1348 = vmul.f32 %v1343, %v1347
  %vm1349 = vweird.f32 %v1312
  %vm1350 = vweird.f32 %v1343
  %vm1351 = vmor %vm1349, %vm1350
  %v1352 = vsel %vm1351, %v1343, %v1348
  %v1353 = vmul.f32 %v1285, %v1322
  %v1354 = vmul.f32 %v1286, %v1332
  %v1355 = vmul.f32 %v1287, %v1342
  %v1356 = vmul.f32 %v1288, %v1352
  %v1357 = vperm.slane %v1264, 0
  %v1358 = vmul.f32 %v1353, %v1357
  %v1359 = vmul.f32 %v1354, %v1357
  %v1360 = vmul.f32 %v1355, %v1357
  %v1361 = vmul.f32 %v1356, %v1357
  %v1362 = vperm.slane %v1264, 1
  %v1363 = vadd.f32 %v1358, %v1362
  %v1364 = vadd.f32 %v1359, %v1362
  %v1365 = vadd.f32 %v1360, %v1362
  %v1366 = vadd.f32 %v1361, %v1362
  %s1367 = scalar_lea.vmem %s9, 16
  %v1368 = vld [vmem:[%s1367] sm:$0xf]
  %v1369 = vld [vmem:[%s1367 + $0x4] sm:$0xf]
  %v1370 = vld [vmem:[%s1367 + $0x8] sm:$0xf]
  %v1371 = vld [vmem:[%s1367 + $0xc] sm:$0xf]
  %v1372 = vpack.c.bf16 %v1364, %v1363
  %v1373 = vpack.c.bf16 %v1366, %v1365
  %s1374 = scalar_lea.vmem %s10, 1
  %v1375 = vld [vmem:[%s1374] sm:$0x1]
  %v1377 = vperm.slane %v1375, 0
  %v1383 = vunpack.c.l.b16 %v1368
  %v1384 = vunpack.c.l.b16 %v1369
  %v1385 = vunpack.c.l.b16 %v1370
  %v1386 = vunpack.c.l.b16 %v1371
  %v1387 = vpack.c.b16 %v1384, %v1383
  %v1388 = vpack.c.b16 %v1386, %v1385
  %v1392 = vsel %vm65, %v1372, 0
  %v1395 = vsel %vm65, %v1373, 0
  %1397 = vmatpush.bf16.msra.mxu0 0
  %1398 = vmatpush.bf16.msra.mxu0 0
  %1399 = vmatpush.bf16.msra.mxu0 0
  %1400 = vmatpush.bf16.msra.mxu0 0
  %1401 = vmatpush.bf16.msra.mxu0 0
  %1402 = vmatpush.bf16.msra.mxu0 0
  %1403 = vmatpush.bf16.msra.mxu0 %v1388
  %1404 = vmatpush.bf16.msra.mxu0 %v1387
  %1405 = vmatmul.bf16.gmra.mxu0 %v1392
  %v1406 = vpop.f32.mrf.mxu0
  %v1407 = vadd.f32 %v1377, %v1406
  %v1408 = vpop.f32.mrf.mxu0
  %v1409 = vadd.f32 %v1377, %v1408
  %1410 = vmatmul.bf16.gmra.mxu0 %v1395
  %v1411 = vpop.f32.mrf.mxu0
  %v1412 = vadd.f32 %v1377, %v1411
  %v1413 = vpop.f32.mrf.mxu0
  %v1414 = vadd.f32 %v1377, %v1413
  %1415 = vdwg.mxu0
  %v1416 = vmul.f32 %v1407, %v1407
  %v1417 = vmul.f32 %v1409, %v1409
  %v1418 = vmul.f32 %v1412, %v1412
  %v1419 = vmul.f32 %v1414, %v1414
  %v1420 = vmul.f32 %v1407, %v1416
  %v1421 = vmul.f32 %v1409, %v1417
  %v1422 = vmul.f32 %v1412, %v1418
  %v1423 = vmul.f32 %v1414, %v1419
  %v1424 = vmul.f32 %v1420, 0.044715
  %v1425 = vmul.f32 %v1421, 0.044715
  %v1426 = vmul.f32 %v1422, 0.044715
  %v1427 = vmul.f32 %v1423, 0.044715
  %v1428 = vadd.f32 %v1407, %v1424
  %v1429 = vadd.f32 %v1409, %v1425
  %v1430 = vadd.f32 %v1412, %v1426
  %v1431 = vadd.f32 %v1414, %v1427
  %v1432 = vmul.f32 %v1428, 0.7978846
  %v1433 = vmul.f32 %v1429, 0.7978846
  %v1434 = vmul.f32 %v1430, 0.7978846
  %v1435 = vmul.f32 %v1431, 0.7978846
  %v1436 = vtanh.pop %v1432
  %v1437 = vtanh.pop %v1433
  %v1438 = vtanh.pop %v1434
  %v1439 = vtanh.pop %v1435
  %v1440 = vadd.f32 %v1436, 1.0
  %v1441 = vadd.f32 %v1437, 1.0
  %v1442 = vadd.f32 %v1438, 1.0
  %v1443 = vadd.f32 %v1439, 1.0
  %v1444 = vmul.f32 %v1440, 0.5
  %v1445 = vmul.f32 %v1441, 0.5
  %v1446 = vmul.f32 %v1442, 0.5
  %v1447 = vmul.f32 %v1443, 0.5
  %v1448 = vmul.f32 %v1407, %v1444
  %v1449 = vmul.f32 %v1409, %v1445
  %v1450 = vmul.f32 %v1412, %v1446
  %v1451 = vmul.f32 %v1414, %v1447
  %s1452 = scalar_lea.vmem %s11, 32
  %v1453 = vld [vmem:[%s1452] sm:$0xf]
  %v1454 = vld [vmem:[%s1452 + $0x4] sm:$0xf]
  %v1455 = vld [vmem:[%s1452 + $0x8] sm:$0xf]
  %v1456 = vld [vmem:[%s1452 + $0xc] sm:$0xf]
  %v1457 = vld [vmem:[%s1452 + $0x10] sm:$0xf]
  %v1458 = vld [vmem:[%s1452 + $0x14] sm:$0xf]
  %v1459 = vld [vmem:[%s1452 + $0x18] sm:$0xf]
  %v1460 = vld [vmem:[%s1452 + $0x1c] sm:$0xf]
  %v1461 = vpack.c.bf16 %v1449, %v1448
  %v1462 = vpack.c.bf16 %v1451, %v1450
  %s1463 = scalar_lea.vmem %s12, 1
  %v1464 = vld [vmem:[%s1463] sm:$0x1]
  %v1466 = vperm.slane %v1464, 0
  %v1476 = vunpack.c.l.b16 %v1453
  %v1477 = vunpack.c.l.b16 %v1454
  %v1478 = vunpack.c.l.b16 %v1455
  %v1479 = vunpack.c.l.b16 %v1456
  %v1480 = vunpack.c.l.b16 %v1457
  %v1481 = vunpack.c.l.b16 %v1458
  %v1482 = vunpack.c.l.b16 %v1459
  %v1483 = vunpack.c.l.b16 %v1460
  %v1484 = vpack.c.b16 %v1477, %v1476
  %v1485 = vpack.c.b16 %v1479, %v1478
  %v1486 = vpack.c.b16 %v1481, %v1480
  %v1487 = vpack.c.b16 %v1483, %v1482
  %v1493 = vsel %vm765, %v1461, 0
  %v1496 = vsel %vm765, %v1462, 0
  %1498 = vmatpush.bf16.msra.mxu0 0
  %1499 = vmatpush.bf16.msra.mxu0 0
  %1500 = vmatpush.bf16.msra.mxu0 0
  %1501 = vmatpush.bf16.msra.mxu0 0
  %1502 = vmatpush.bf16.msra.mxu0 %v1487
  %1503 = vmatpush.bf16.msra.mxu0 %v1486
  %1504 = vmatpush.bf16.msra.mxu0 %v1485
  %1505 = vmatpush.bf16.msra.mxu0 %v1484
  %1506 = vmatmul.bf16.gmra.mxu0 %v1493
  %v1507 = vpop.f32.mrf.mxu0
  %v1508 = vadd.f32 %v1466, %v1507
  %v1509 = vpop.f32.mrf.mxu0
  %v1510 = vadd.f32 %v1466, %v1509
  %1511 = vmatmul.bf16.gmra.mxu0 %v1496
  %v1512 = vpop.f32.mrf.mxu0
  %v1513 = vadd.f32 %v1466, %v1512
  %v1514 = vpop.f32.mrf.mxu0
  %v1515 = vadd.f32 %v1466, %v1514
  %1516 = vdwg.mxu0
  %s1517 = scalar_lea.vmem %s13, 2
  %v1518 = vld [vmem:[%s1517] sm:$0x3]
  %v1519 = vadd.f32 %v1363, %v1508
  %v1520 = vadd.f32 %v1364, %v1510
  %v1521 = vadd.f32 %v1365, %v1513
  %v1522 = vadd.f32 %v1366, %v1515
  %v1523 = vsel %vm65, %v1519, 0.0
  %1524 = vadd.xlane.f32.xlu0 %v1523
  %v1525 = vpop.xlane.xlu0 %1524
  %v1526 = vsel %vm65, %v1520, 0.0
  %1527 = vadd.xlane.f32.xlu0 %v1526
  %v1528 = vpop.xlane.xlu0 %1527
  %v1529 = vsel %vm65, %v1521, 0.0
  %1530 = vadd.xlane.f32.xlu0 %v1529
  %v1531 = vpop.xlane.xlu0 %1530
  %v1532 = vsel %vm65, %v1522, 0.0
  %1533 = vadd.xlane.f32.xlu0 %v1532
  %v1534 = vpop.xlane.xlu0 %1533
  %v1535 = vmul.f32 %v1525, %v84
  %v1536 = vmul.f32 %v1528, %v84
  %v1537 = vmul.f32 %v1531, %v84
  %v1538 = vmul.f32 %v1534, %v84
  %v1539 = vsub.f32 %v1519, %v1535
  %v1540 = vsub.f32 %v1520, %v1536
  %v1541 = vsub.f32 %v1521, %v1537
  %v1542 = vsub.f32 %v1522, %v1538
  %v1543 = vmul.f32 %v1539, %v1539
  %v1544 = vmul.f32 %v1540, %v1540
  %v1545 = vmul.f32 %v1541, %v1541
  %v1546 = vmul.f32 %v1542, %v1542
  %v1547 = vsel %vm65, %v1543, 0.0
  %1548 = vadd.xlane.f32.xlu0 %v1547
  %v1549 = vpop.xlane.xlu0 %1548
  %v1550 = vsel %vm65, %v1544, 0.0
  %1551 = vadd.xlane.f32.xlu0 %v1550
  %v1552 = vpop.xlane.xlu0 %1551
  %v1553 = vsel %vm65, %v1545, 0.0
  %1554 = vadd.xlane.f32.xlu0 %v1553
  %v1555 = vpop.xlane.xlu0 %1554
  %v1556 = vsel %vm65, %v1546, 0.0
  %1557 = vadd.xlane.f32.xlu0 %v1556
  %v1558 = vpop.xlane.xlu0 %1557
  %v1559 = vmul.f32 %v1549, %v84
  %v1560 = vmul.f32 %v1552, %v84
  %v1561 = vmul.f32 %v1555, %v84
  %v1562 = vmul.f32 %v1558, %v84
  %v1563 = vadd.f32 %v1559, 1e-12
  %v1564 = vadd.f32 %v1560, 1e-12
  %v1565 = vadd.f32 %v1561, 1e-12
  %v1566 = vadd.f32 %v1562, 1e-12
  %v1567 = vrsqrt.pop %v1563
  %v1568 = vmul.f32 %v1567, %v1563
  %v1569 = vmul.f32 %v1568, %v1567
  %v1570 = vmul.f32 0.5, %v1569
  %v1571 = vsub.f32 1.5, %v1570
  %v1572 = vmul.f32 %v1567, %v1571
  %vm1573 = vweird.f32 %v1563
  %vm1574 = vweird.f32 %v1567
  %vm1575 = vmor %vm1573, %vm1574
  %v1576 = vsel %vm1575, %v1567, %v1572
  %v1577 = vrsqrt.pop %v1564
  %v1578 = vmul.f32 %v1577, %v1564
  %v1579 = vmul.f32 %v1578, %v1577
  %v1580 = vmul.f32 0.5, %v1579
  %v1581 = vsub.f32 1.5, %v1580
  %v1582 = vmul.f32 %v1577, %v1581
  %vm1583 = vweird.f32 %v1564
  %vm1584 = vweird.f32 %v1577
  %vm1585 = vmor %vm1583, %vm1584
  %v1586 = vsel %vm1585, %v1577, %v1582
  %v1587 = vrsqrt.pop %v1565
  %v1588 = vmul.f32 %v1587, %v1565
  %v1589 = vmul.f32 %v1588, %v1587
  %v1590 = vmul.f32 0.5, %v1589
  %v1591 = vsub.f32 1.5, %v1590
  %v1592 = vmul.f32 %v1587, %v1591
  %vm1593 = vweird.f32 %v1565
  %vm1594 = vweird.f32 %v1587
  %vm1595 = vmor %vm1593, %vm1594
  %v1596 = vsel %vm1595, %v1587, %v1592
  %v1597 = vrsqrt.pop %v1566
  %v1598 = vmul.f32 %v1597, %v1566
  %v1599 = vmul.f32 %v1598, %v1597
  %v1600 = vmul.f32 0.5, %v1599
  %v1601 = vsub.f32 1.5, %v1600
  %v1602 = vmul.f32 %v1597, %v1601
  %vm1603 = vweird.f32 %v1566
  %vm1604 = vweird.f32 %v1597
  %vm1605 = vmor %vm1603, %vm1604
  %v1606 = vsel %vm1605, %v1597, %v1602
  %v1607 = vmul.f32 %v1539, %v1576
  %v1608 = vmul.f32 %v1540, %v1586
  %v1609 = vmul.f32 %v1541, %v1596
  %v1610 = vmul.f32 %v1542, %v1606
  %v1611 = vperm.slane %v1518, 0
  %v1612 = vmul.f32 %v1607, %v1611
  %v1613 = vmul.f32 %v1608, %v1611
  %v1614 = vmul.f32 %v1609, %v1611
  %v1615 = vmul.f32 %v1610, %v1611
  %v1616 = vperm.slane %v1518, 1
  %v1617 = vadd.f32 %v1612, %v1616
  %v1618 = vadd.f32 %v1613, %v1616
  %v1619 = vadd.f32 %v1614, %v1616
  %v1620 = vadd.f32 %v1615, %v1616
  %v1621 = vld [vmem:[%s2] sm:$0xf]
  %v1622 = vpack.c.bf16 %v1621, %v1621
  %v1623 = vpack.c.bf16 %v1618, %v1617
  %v1624 = vpack.c.bf16 %v1620, %v1619
  %v1626 = vsel %vm65, %v1622, 0
  %1628 = vmatpush.bf16.msra.mxu0 0
  %1629 = vmatpush.bf16.msra.mxu0 0
  %1630 = vmatpush.bf16.msra.mxu0 0
  %1631 = vmatpush.bf16.msra.mxu0 0
  %1632 = vmatpush.bf16.msra.mxu0 0
  %1633 = vmatpush.bf16.msra.mxu0 0
  %1634 = vmatpush.bf16.msra.mxu0 %v1624
  %1635 = vmatpush.bf16.msra.mxu0 %v1623
  %1636 = vmatmul.bf16.gmra.mxu0 %v1626
  %v1637 = vpop.f32.mrf.mxu0
  %v1638 = vadd.f32 0.0, %v1637
  %v1639 = vpop.f32.mrf.mxu0
  %1640 = vdwg.mxu0
  %v1641 = vld [vmem:[%s14] sm:$0xf]
  %v1642 = vld [vmem:[%s14 + $0x4] sm:$0xf]
  %v1643 = vld [vmem:[%s14 + $0x8] sm:$0xf]
  %v1644 = vld [vmem:[%s14 + $0xc] sm:$0xf]
  %v1645 = vpack.c.bf16 %v1638, %v1638
  %v1646 = vld [vmem:[%s15] sm:$0x1]
  %v1648 = vperm.slane %v1646, 0
  %v1654 = vunpack.c.l.b16 %v1641
  %v1655 = vunpack.c.l.b16 %v1642
  %v1656 = vunpack.c.l.b16 %v1643
  %v1657 = vunpack.c.l.b16 %v1644
  %v1658 = vpack.c.b16 %v1655, %v1654
  %v1659 = vpack.c.b16 %v1657, %v1656
  %v1663 = vsel %vm65, %v1645, 0
  %1665 = vmatpush.bf16.msra.mxu0 0
  %1666 = vmatpush.bf16.msra.mxu0 0
  %1667 = vmatpush.bf16.msra.mxu0 0
  %1668 = vmatpush.bf16.msra.mxu0 0
  %1669 = vmatpush.bf16.msra.mxu0 0
  %1670 = vmatpush.bf16.msra.mxu0 0
  %1671 = vmatpush.bf16.msra.mxu0 %v1659
  %1672 = vmatpush.bf16.msra.mxu0 %v1658
  %1673 = vmatmul.bf16.gmra.mxu0 %v1663
  %v1674 = vpop.f32.mrf.mxu0
  %v1675 = vadd.f32 %v1648, %v1674
  %v1676 = vpop.f32.mrf.mxu0
  %1677 = vdwg.mxu0
  %v1678 = vmax.f32 %v1675, 0.0
  %v1679 = vld [vmem:[%s16] sm:$0xf]
  %v1680 = vpack.c.bf16 %v1678, %v1678
  %v1681 = vld [vmem:[%s17] sm:$0x1]
  %v1683 = vperm.slane %v1681, 0
  %vm1685 = vcmask 64512
  %v1687 = vsel %vm1685, %v1680, 0
  %vm1689 = vcmask 1043456
  %v1691 = vsel %vm1689, %v1679, 0
  %1693 = vmatpush.bf16.msra.mxu0 0
  %1694 = vmatpush.bf16.msra.mxu0 0
  %1695 = vmatpush.bf16.msra.mxu0 0
  %1696 = vmatpush.bf16.msra.mxu0 0
  %1697 = vmatpush.bf16.msra.mxu0 0
  %1698 = vmatpush.bf16.msra.mxu0 0
  %1699 = vmatpush.bf16.msra.mxu0 0
  %1700 = vmatpush.bf16.msra.mxu0 %v1691
  %1701 = vmatmul.bf16.gmra.mxu0 %v1687
  %v1702 = vpop.f32.mrf.mxu0
  %v1703 = vadd.f32 %v1683, %v1702
  %v1704 = vpop.f32.mrf.mxu0
  %1705 = vdwg.mxu0
  %v1706 = vmax.f32 %v1703, 0.0
  %1707 = vst [vmem:[%s18] sm:$0xf] %v1706
  // Predicated region
  $region74: #{siamese_forward.1} parent=0 // pred_check
    _
  $region75: #{siamese_forward.1} parent=0 // pred_check_branch
    %1709 = sbr.rel (0) target = $region77
  $region76: #{siamese_forward.1} parent=0 // pred_region
    _
  $region77: #{siamese_forward.1} parent=0 // pred_fallthru
    _
  // Predicated region
  $region78: #{siamese_forward.1} parent=0 // pred_check
    _
  $region79: #{siamese_forward.1} parent=0 // pred_check_branch
    %1711 = sbr.rel (0) target = $region81
  $region80: #{siamese_forward.1} parent=0 // pred_region
    _
  $region81: #{siamese_forward.1} parent=0 // pred_fallthru
    _

</llo_original>
